<compile_context>
chip_gen: v7x
topology: tpu7x:2x2x1
jax: 0.10.0
libtpu: 0.0.40
codegen_flags: <defaults>
</compile_context>

<pallas_src>
import jax
import jax.numpy as jnp
from jax import lax
from jax.experimental import pallas as pl
from jax.experimental.pallas import tpu as pltpu
import numpy as np


def _round_up(n, m):
    return ((n + m - 1) // m) * m


def _make_kernel(num_pairs0, num_pairs1, size, small_size):
    act_cols = small_size - 1          # real activation columns used by task 1
    col_off = size - act_cols          # compile-time start of the trailing window

    def kernel(rows0_ref, codes0_ref, rows1_ref, codes1_ref,    # scalar prefetch (SMEM)
               tgt0_ref, tgt1_ref, a_ref, w_ref, w1_ref,        # VMEM inputs
               logits0_ref, loss_ref,                           # outputs
               a0_buf, w0_buf, a1_buf, w1_buf):                 # VMEM scratch
        npad0 = a0_buf.shape[0]
        npad1 = a1_buf.shape[0]

        # Init gather buffers: activation buffers get a constant 1.0 bias column
        # (this folds torch.cat([act, ones], dim=1) into the kernel); weight
        # buffers are zeroed so padded pairs stay finite (masked out of loss).
        col0 = lax.broadcasted_iota(jnp.int32, (npad0, size + 1), 1)
        a0_buf[...] = jnp.where(col0 == size, 1.0, 0.0).astype(a0_buf.dtype)
        col1 = lax.broadcasted_iota(jnp.int32, (npad1, size + 1), 1)
        a1_buf[...] = jnp.where(col1 == size, 1.0, 0.0).astype(a1_buf.dtype)
        w0_buf[...] = jnp.zeros_like(w0_buf)
        w1_buf[...] = jnp.zeros_like(w1_buf)

        # Data-dependent row gather, VMEM -> VMEM (sources were bulk-DMA'd once;
        # no per-pair HBM latency on the critical path).
        @pl.loop(0, num_pairs0)
        def _(k):
            i = rows0_ref[k]
            j = codes0_ref[k]
            a0_buf[pl.ds(k, 1), 0:size] = a_ref[pl.ds(i, 1), :].astype(a0_buf.dtype)
            w0_buf[pl.ds(k, 1), :] = w_ref[pl.ds(j, 1), :].astype(w0_buf.dtype)

        @pl.loop(0, num_pairs1)
        def _(k):
            i = rows1_ref[k]
            j = codes1_ref[k]
            a1_buf[pl.ds(k, 1), 0:size] = a_ref[pl.ds(i, 1), :].astype(a1_buf.dtype)
            w1_buf[pl.ds(k, 1), :] = w1_ref[pl.ds(j, 1), :].astype(w1_buf.dtype)

        # embedding_dot: per-pair dot product (VPU multiply + XLU lane reduce).
        # Task 0 uses all columns (+ bias); task 1 uses only the trailing
        # `small_size` window (which includes the bias column).
        logits0 = jnp.sum(a0_buf[...] * w0_buf[...], axis=1)            # (npad0,)
        a1s = a1_buf[:, col_off:size + 1]                               # (npad1, small_size)
        logits1 = jnp.sum(a1s * w1_buf[...], axis=1)                    # (npad1,)

        logits0_ref[...] = logits0[None, :]                             # lane-dense store

        # binary_cross_entropy_with_logits, reduction='sum', padding masked.
        def bce_sum(logits_1d, tgt_2d, n_valid):
            npad = tgt_2d.shape[1]
            x = logits_1d[None, :]
            bce = (jnp.maximum(x, 0.0) - x * tgt_2d
                   + jnp.log1p(jnp.exp(-jnp.abs(x))))
            valid = lax.broadcasted_iota(jnp.int32, (1, npad), 1) < n_valid
            return jnp.sum(jnp.where(valid, bce, 0.0))

        loss = (bce_sum(logits0, tgt0_ref[...], num_pairs0)
                + bce_sum(logits1, tgt1_ref[...], num_pairs1))
        loss_ref[...] = loss.reshape(1, 1)

    return kernel


def sequential_task_forward(rnn_output, data, weight, weight1, size):
    """JAX/Pallas equivalent of SequentialTask.forward -> (final, loss + loss1)."""
    (idx0, tgt0, _seen0, idx1, tgt1, _seen1) = data

    reshaped = rnn_output.reshape(-1, size)      # (n_rows, size); no bias concat in HBM
    n_rows = int(reshaped.shape[0])
    small_size = size // 4 + 1

    num_pairs0 = int(idx0.shape[0])
    num_pairs1 = int(idx1.shape[0])
    assert num_pairs0 > 0 and num_pairs1 > 0, "empty pair lists not supported"
    npad0 = _round_up(num_pairs0, 128)
    npad1 = _round_up(num_pairs1, 128)

    # 1-D int32 index arrays (cheap in SMEM) and lane-padded targets.
    rows0 = jnp.pad(idx0[:, 0].astype(jnp.int32), (0, npad0 - num_pairs0))
    codes0 = jnp.pad(idx0[:, 1].astype(jnp.int32), (0, npad0 - num_pairs0))
    rows1 = jnp.pad(idx1[:, 0].astype(jnp.int32), (0, npad1 - num_pairs1))
    codes1 = jnp.pad(idx1[:, 1].astype(jnp.int32), (0, npad1 - num_pairs1))
    tgt0p = jnp.pad(tgt0.astype(jnp.float32), (0, npad0 - num_pairs0)).reshape(1, npad0)
    tgt1p = jnp.pad(tgt1.astype(jnp.float32), (0, npad1 - num_pairs1)).reshape(1, npad1)

    kernel = _make_kernel(num_pairs0, num_pairs1, size, small_size)

    grid_spec = pltpu.PrefetchScalarGridSpec(
        num_scalar_prefetch=4,
        grid=(1,),
        in_specs=[
            pl.BlockSpec((1, npad0), lambda i, *_: (0, 0)),            # targets 0
            pl.BlockSpec((1, npad1), lambda i, *_: (0, 0)),            # targets 1
            pl.BlockSpec((n_rows, size), lambda i, *_: (0, 0)),        # activations (bulk DMA)
            pl.BlockSpec(tuple(weight.shape), lambda i, *_: (0, 0)),   # code table 0
            pl.BlockSpec(tuple(weight1.shape), lambda i, *_: (0, 0)),  # code table 1
        ],
        out_specs=[
            pl.BlockSpec((1, npad0), lambda i, *_: (0, 0)),            # logits (lane-dense)
            pl.BlockSpec((1, 1), lambda i, *_: (0, 0)),                # summed loss
        ],
        scratch_shapes=[
            pltpu.VMEM((npad0, size + 1), jnp.float32),    # gathered activations + bias col
            pltpu.VMEM((npad0, size + 1), jnp.float32),    # gathered code rows
            pltpu.VMEM((npad1, size + 1), jnp.float32),    # gathered activations + bias col
            pltpu.VMEM((npad1, small_size), jnp.float32),  # gathered small code rows
        ],
    )

    logits0_pad, loss = pl.pallas_call(
        kernel,
        out_shape=(jax.ShapeDtypeStruct((1, npad0), jnp.float32),
                   jax.ShapeDtypeStruct((1, 1), jnp.float32)),
        grid_spec=grid_spec,
        compiler_params=pltpu.CompilerParams(dimension_semantics=("arbitrary",)),
    )(rows0, codes0, rows1, codes1, tgt0p, tgt1p, reshaped, weight, weight1)

    final = logits0_pad[0, :num_pairs0]
    return final, loss[0, 0]


def _reference_forward(rnn_output, data, weight, weight1, size):
    """Pure-JAX reference for correctness checking (mirrors the torch module)."""
    (idx0, tgt0, _s0, idx1, tgt1, _s1) = data
    reshaped = rnn_output.reshape(-1, size)
    rnn_with_bias = jnp.concatenate(
        [reshaped, jnp.ones((reshaped.shape[0], 1), reshaped.dtype)], axis=1)

    def edot(a, w, idx):
        return jnp.sum(a[idx[:, 0]] * w[idx[:, 1]], axis=1)

    def bce_sum(x, t):
        return jnp.sum(jnp.maximum(x, 0.0) - x * t + jnp.log1p(jnp.exp(-jnp.abs(x))))

    final = edot(rnn_with_bias, weight, idx0)
    loss = bce_sum(final, tgt0)
    small_size = size // 4 + 1
    final1 = edot(rnn_with_bias[:, -small_size:], weight1, idx1)
    loss1 = bce_sum(final1, tgt1)
    return final, loss + loss1


if __name__ == "__main__":
    key = jax.random.PRNGKey(0)
    size = 32                      # config['size']
    batch, seq = 2, 8              # rnn_output: (batch, seq, size)
    num_codes, num_codes1 = 50, 20
    small_size = size // 4 + 1     # 9
    num_pairs0, num_pairs1 = 24, 16
    n_rows = batch * seq

    k = jax.random.split(key, 9)
    rnn_output = jax.random.normal(k[0], (batch, seq, size), jnp.float32)
    # Deterministic synthetic parameters (shapes implied by the forward pass).
    weight = 0.1 * jax.random.normal(k[1], (num_codes, size + 1), jnp.float32)
    weight1 = 0.1 * jax.random.normal(k[2], (num_codes1, small_size), jnp.float32)

    idx0 = jnp.stack(
        [jax.random.randint(k[3], (num_pairs0,), 0, n_rows),
         jax.random.randint(k[4], (num_pairs0,), 0, num_codes)], axis=1
    ).astype(jnp.int32)
    tgt0 = jax.random.bernoulli(k[5], 0.5, (num_pairs0,)).astype(jnp.float32)
    idx1 = jnp.stack(
        [jax.random.randint(k[6], (num_pairs1,), 0, n_rows),
         jax.random.randint(k[7], (num_pairs1,), 0, num_codes1)], axis=1
    ).astype(jnp.int32)
    tgt1 = jax.random.bernoulli(k[8], 0.5, (num_pairs1,)).astype(jnp.float32)
    # seen_before tensors are part of `data` but unused by forward.
    seen0 = jnp.zeros((num_pairs0,), jnp.float32)
    seen1 = jnp.zeros((num_pairs1,), jnp.float32)
    data = (idx0, tgt0, seen0, idx1, tgt1, seen1)

    final, total_loss = sequential_task_forward(rnn_output, data, weight, weight1, size)
    (final, total_loss) = jax.block_until_ready((final, total_loss))

    ref_final, ref_loss = _reference_forward(rnn_output, data, weight, weight1, size)
    np.testing.assert_allclose(np.asarray(final), np.asarray(ref_final),
                               rtol=1e-4, atol=1e-4)
    np.testing.assert_allclose(float(total_loss), float(ref_loss),
                               rtol=1e-4, atol=1e-4)

    print("KERNEL_OK")
</pallas_src>

<mosaic_0001>
module attributes {stable_mosaic.version = 11 : i64} {
  func.func @kernel(%arg0: i32, %arg1: memref<128xi32, #tpu.memory_space<smem>>, %arg2: memref<128xi32, #tpu.memory_space<smem>>, %arg3: memref<128xi32, #tpu.memory_space<smem>>, %arg4: memref<128xi32, #tpu.memory_space<smem>>, %arg5: memref<1x128xf32, #tpu.memory_space<vmem>>, %arg6: memref<1x128xf32, #tpu.memory_space<vmem>>, %arg7: memref<16x32xf32, #tpu.memory_space<vmem>>, %arg8: memref<50x33xf32, #tpu.memory_space<vmem>>, %arg9: memref<20x9xf32, #tpu.memory_space<vmem>>, %arg10: memref<1x128xf32, #tpu.memory_space<vmem>>, %arg11: memref<1x1xf32, #tpu.memory_space<vmem>>, %arg12: memref<128x33xf32, #tpu.memory_space<vmem>>, %arg13: memref<128x33xf32, #tpu.memory_space<vmem>>, %arg14: memref<128x33xf32, #tpu.memory_space<vmem>>, %arg15: memref<128x9xf32, #tpu.memory_space<vmem>>) attributes {dimension_semantics = [#tpu.dimension_semantics<arbitrary>], iteration_bounds = array<i64: 1>, scalar_prefetch = 4 : i64, scratch_operands = 4 : i64, tpu.core_type = #tpu.core_type<tc>, window_params = [{pipeline_mode = #tpu.pipeline_mode<synchronous>, transform_indices = @transform_0, window_bounds = array<i64: 1, 128>}, {pipeline_mode = #tpu.pipeline_mode<synchronous>, transform_indices = @transform_1, window_bounds = array<i64: 1, 128>}, {pipeline_mode = #tpu.pipeline_mode<synchronous>, transform_indices = @transform_2, window_bounds = array<i64: 16, 32>}, {pipeline_mode = #tpu.pipeline_mode<synchronous>, transform_indices = @transform_3, window_bounds = array<i64: 50, 33>}, {pipeline_mode = #tpu.pipeline_mode<synchronous>, transform_indices = @transform_4, window_bounds = array<i64: 20, 9>}, {pipeline_mode = #tpu.pipeline_mode<synchronous>, transform_indices = @transform_5, window_bounds = array<i64: 1, 128>}, {pipeline_mode = #tpu.pipeline_mode<synchronous>, transform_indices = @transform_6, window_bounds = array<i64: 1, 1>}]} {
    %0 = tpu.iota {dimensions = array<i32: 1>} : vector<128x33xi32>
    %c32_i32 = arith.constant 32 : i32
    %1 = vector.broadcast %c32_i32 : i32 to vector<128x33xi32>
    %2 = arith.cmpi eq, %0, %1 : vector<128x33xi32>
    %cst = arith.constant 1.000000e+00 : f32
    %cst_0 = arith.constant 0.000000e+00 : f32
    %3 = vector.broadcast %cst : f32 to vector<128x33xf32>
    %4 = vector.broadcast %cst_0 : f32 to vector<128x33xf32>
    %5 = arith.select %2, %3, %4 : vector<128x33xi1>, vector<128x33xf32>
    %c0 = arith.constant 0 : index
    %c0_1 = arith.constant 0 : index
    %6 = vector.load %arg12[%c0, %c0_1] : memref<128x33xf32, #tpu.memory_space<vmem>>, vector<128x33xf32>
    tpu.vector_store %arg12[%c0, %c0_1], %5 {strides = array<i32>} : memref<128x33xf32, #tpu.memory_space<vmem>>, vector<128x33xf32>,
    %7 = tpu.iota {dimensions = array<i32: 1>} : vector<128x33xi32>
    %c32_i32_2 = arith.constant 32 : i32
    %8 = vector.broadcast %c32_i32_2 : i32 to vector<128x33xi32>
    %9 = arith.cmpi eq, %7, %8 : vector<128x33xi32>
    %cst_3 = arith.constant 1.000000e+00 : f32
    %cst_4 = arith.constant 0.000000e+00 : f32
    %10 = vector.broadcast %cst_3 : f32 to vector<128x33xf32>
    %11 = vector.broadcast %cst_4 : f32 to vector<128x33xf32>
    %12 = arith.select %9, %10, %11 : vector<128x33xi1>, vector<128x33xf32>
    %c0_5 = arith.constant 0 : index
    %c0_6 = arith.constant 0 : index
    %13 = vector.load %arg14[%c0_5, %c0_6] : memref<128x33xf32, #tpu.memory_space<vmem>>, vector<128x33xf32>
    tpu.vector_store %arg14[%c0_5, %c0_6], %12 {strides = array<i32>} : memref<128x33xf32, #tpu.memory_space<vmem>>, vector<128x33xf32>,
    %cst_7 = arith.constant 0.000000e+00 : f32
    %14 = vector.broadcast %cst_7 : f32 to vector<128x33xf32>
    %c0_8 = arith.constant 0 : index
    %c0_9 = arith.constant 0 : index
    %15 = vector.load %arg13[%c0_8, %c0_9] : memref<128x33xf32, #tpu.memory_space<vmem>>, vector<128x33xf32>
    tpu.vector_store %arg13[%c0_8, %c0_9], %14 {strides = array<i32>} : memref<128x33xf32, #tpu.memory_space<vmem>>, vector<128x33xf32>,
    %cst_10 = arith.constant 0.000000e+00 : f32
    %16 = vector.broadcast %cst_10 : f32 to vector<128x9xf32>
    %c0_11 = arith.constant 0 : index
    %c0_12 = arith.constant 0 : index
    %17 = vector.load %arg15[%c0_11, %c0_12] : memref<128x9xf32, #tpu.memory_space<vmem>>, vector<128x9xf32>
    tpu.vector_store %arg15[%c0_11, %c0_12], %16 {strides = array<i32>} : memref<128x9xf32, #tpu.memory_space<vmem>>, vector<128x9xf32>,
    %c0_i32 = arith.constant 0 : i32
    %c24_i32 = arith.constant 24 : i32
    %18 = arith.addi %c0_i32, %c24_i32 : i32
    %c1_i32 = arith.constant 1 : i32
    scf.for %arg16 = %c0_i32 to %18 step %c1_i32  : i32 {
      %c1_i32_44 = arith.constant 1 : i32
      %75 = arith.muli %arg16, %c1_i32_44 : i32
      %c0_i32_45 = arith.constant 0 : i32
      %76 = arith.addi %c0_i32_45, %75 : i32
      %77 = arith.index_cast %76 : i32 to index
      %78 = memref.load %arg1[%77] : memref<128xi32, #tpu.memory_space<smem>>
      %79 = arith.index_cast %76 : i32 to index
      %80 = memref.load %arg2[%79] : memref<128xi32, #tpu.memory_space<smem>>
      %81 = arith.index_cast %78 : i32 to index
      %c0_46 = arith.constant 0 : index
      %82 = vector.load %arg7[%81, %c0_46] : memref<16x32xf32, #tpu.memory_space<vmem>>, vector<1x32xf32>
      %83 = arith.index_cast %76 : i32 to index
      %c0_47 = arith.constant 0 : index
      %84 = vector.load %arg12[%83, %c0_47] : memref<128x33xf32, #tpu.memory_space<vmem>>, vector<1x32xf32>
      tpu.vector_store %arg12[%83, %c0_47], %82 {strides = array<i32>} : memref<128x33xf32, #tpu.memory_space<vmem>>, vector<1x32xf32>,
      %85 = arith.index_cast %80 : i32 to index
      %c0_48 = arith.constant 0 : index
      %86 = vector.load %arg8[%85, %c0_48] : memref<50x33xf32, #tpu.memory_space<vmem>>, vector<1x33xf32>
      %87 = arith.index_cast %76 : i32 to index
      %c0_49 = arith.constant 0 : index
      %88 = vector.load %arg13[%87, %c0_49] : memref<128x33xf32, #tpu.memory_space<vmem>>, vector<1x33xf32>
      tpu.vector_store %arg13[%87, %c0_49], %86 {strides = array<i32>} : memref<128x33xf32, #tpu.memory_space<vmem>>, vector<1x33xf32>,
    }
    %c24_i32_13 = arith.constant 24 : i32
    %c0_i32_14 = arith.constant 0 : i32
    %c16_i32 = arith.constant 16 : i32
    %19 = arith.addi %c0_i32_14, %c16_i32 : i32
    %c1_i32_15 = arith.constant 1 : i32
    scf.for %arg16 = %c0_i32_14 to %19 step %c1_i32_15  : i32 {
      %c1_i32_44 = arith.constant 1 : i32
      %75 = arith.muli %arg16, %c1_i32_44 : i32
      %c0_i32_45 = arith.constant 0 : i32
      %76 = arith.addi %c0_i32_45, %75 : i32
      %77 = arith.index_cast %76 : i32 to index
      %78 = memref.load %arg3[%77] : memref<128xi32, #tpu.memory_space<smem>>
      %79 = arith.index_cast %76 : i32 to index
      %80 = memref.load %arg4[%79] : memref<128xi32, #tpu.memory_space<smem>>
      %81 = arith.index_cast %78 : i32 to index
      %c0_46 = arith.constant 0 : index
      %82 = vector.load %arg7[%81, %c0_46] : memref<16x32xf32, #tpu.memory_space<vmem>>, vector<1x32xf32>
      %83 = arith.index_cast %76 : i32 to index
      %c0_47 = arith.constant 0 : index
      %84 = vector.load %arg14[%83, %c0_47] : memref<128x33xf32, #tpu.memory_space<vmem>>, vector<1x32xf32>
      tpu.vector_store %arg14[%83, %c0_47], %82 {strides = array<i32>} : memref<128x33xf32, #tpu.memory_space<vmem>>, vector<1x32xf32>,
      %85 = arith.index_cast %80 : i32 to index
      %c0_48 = arith.constant 0 : index
      %86 = vector.load %arg9[%85, %c0_48] : memref<20x9xf32, #tpu.memory_space<vmem>>, vector<1x9xf32>
      %87 = arith.index_cast %76 : i32 to index
      %c0_49 = arith.constant 0 : index
      %88 = vector.load %arg15[%87, %c0_49] : memref<128x9xf32, #tpu.memory_space<vmem>>, vector<1x9xf32>
      tpu.vector_store %arg15[%87, %c0_49], %86 {strides = array<i32>} : memref<128x9xf32, #tpu.memory_space<vmem>>, vector<1x9xf32>,
    }
    %c16_i32_16 = arith.constant 16 : i32
    %c0_17 = arith.constant 0 : index
    %c0_18 = arith.constant 0 : index
    %20 = vector.load %arg12[%c0_17, %c0_18] : memref<128x33xf32, #tpu.memory_space<vmem>>, vector<128x33xf32>
    %c0_19 = arith.constant 0 : index
    %c0_20 = arith.constant 0 : index
    %21 = vector.load %arg13[%c0_19, %c0_20] : memref<128x33xf32, #tpu.memory_space<vmem>>, vector<128x33xf32>
    %22 = arith.mulf %20, %21 : vector<128x33xf32>
    %cst_21 = arith.constant dense<0.000000e+00> : vector<128xf32>
    %23 = vector.multi_reduction <add>, %22, %cst_21 [1] : vector<128x33xf32> to vector<128xf32>
    %c0_22 = arith.constant 0 : index
    %c24 = arith.constant 24 : index
    %24 = vector.load %arg14[%c0_22, %c24] : memref<128x33xf32, #tpu.memory_space<vmem>>, vector<128x9xf32>
    %c0_23 = arith.constant 0 : index
    %c0_24 = arith.constant 0 : index
    %25 = vector.load %arg15[%c0_23, %c0_24] : memref<128x9xf32, #tpu.memory_space<vmem>>, vector<128x9xf32>
    %26 = arith.mulf %24, %25 : vector<128x9xf32>
    %cst_25 = arith.constant dense<0.000000e+00> : vector<128xf32>
    %27 = vector.multi_reduction <add>, %26, %cst_25 [1] : vector<128x9xf32> to vector<128xf32>
    %28 = vector.shape_cast %23 : vector<128xf32> to vector<1x128xf32>
    %c0_26 = arith.constant 0 : index
    %c0_27 = arith.constant 0 : index
    %29 = vector.load %arg10[%c0_26, %c0_27] : memref<1x128xf32, #tpu.memory_space<vmem>>, vector<1x128xf32>
    tpu.vector_store %arg10[%c0_26, %c0_27], %28 {strides = array<i32>} : memref<1x128xf32, #tpu.memory_space<vmem>>, vector<1x128xf32>,
    %c0_28 = arith.constant 0 : index
    %c0_29 = arith.constant 0 : index
    %30 = vector.load %arg5[%c0_28, %c0_29] : memref<1x128xf32, #tpu.memory_space<vmem>>, vector<1x128xf32>
    %31 = vector.shape_cast %23 : vector<128xf32> to vector<1x128xf32>
    %cst_30 = arith.constant 0.000000e+00 : f32
    %32 = vector.broadcast %cst_30 : f32 to vector<1x128xf32>
    %33 = arith.maximumf %31, %32 : vector<1x128xf32>
    %34 = arith.mulf %31, %30 : vector<1x128xf32>
    %35 = arith.subf %33, %34 : vector<1x128xf32>
    %36 = math.absf %31 : vector<1x128xf32>
    %cst_31 = arith.constant 0.000000e+00 : f32
    %37 = vector.broadcast %cst_31 : f32 to vector<1x128xf32>
    %38 = arith.subf %37, %36 : vector<1x128xf32>
    %39 = math.exp %38 : vector<1x128xf32>
    %40 = math.log1p %39 : vector<1x128xf32>
    %41 = arith.addf %35, %40 : vector<1x128xf32>
    %42 = tpu.iota {dimensions = array<i32: 1>} : vector<1x128xi32>
    %c24_i32_32 = arith.constant 24 : i32
    %43 = vector.broadcast %c24_i32_32 : i32 to vector<1x128xi32>
    %44 = arith.cmpi slt, %42, %43 : vector<1x128xi32>
    %cst_33 = arith.constant 0.000000e+00 : f32
    %45 = vector.broadcast %cst_33 : f32 to vector<1x128xf32>
    %46 = arith.select %44, %41, %45 : vector<1x128xi1>, vector<1x128xf32>
    %47 = vector.shape_cast %46 : vector<1x128xf32> to vector<1x1x128xf32>
    %cst_34 = arith.constant dense<0.000000e+00> : vector<1xf32>
    %48 = vector.multi_reduction <add>, %47, %cst_34 [1, 2] : vector<1x1x128xf32> to vector<1xf32>
    %49 = vector.shape_cast %48 : vector<1xf32> to vector<1x1x1xf32>
    %50 = vector.extract %49[0, 0, 0] : f32 from vector<1x1x1xf32>
    %c0_35 = arith.constant 0 : index
    %c0_36 = arith.constant 0 : index
    %51 = vector.load %arg6[%c0_35, %c0_36] : memref<1x128xf32, #tpu.memory_space<vmem>>, vector<1x128xf32>
    %52 = vector.shape_cast %27 : vector<128xf32> to vector<1x128xf32>
    %cst_37 = arith.constant 0.000000e+00 : f32
    %53 = vector.broadcast %cst_37 : f32 to vector<1x128xf32>
    %54 = arith.maximumf %52, %53 : vector<1x128xf32>
    %55 = arith.mulf %52, %51 : vector<1x128xf32>
    %56 = arith.subf %54, %55 : vector<1x128xf32>
    %57 = math.absf %52 : vector<1x128xf32>
    %cst_38 = arith.constant 0.000000e+00 : f32
    %58 = vector.broadcast %cst_38 : f32 to vector<1x128xf32>
    %59 = arith.subf %58, %57 : vector<1x128xf32>
    %60 = math.exp %59 : vector<1x128xf32>
    %61 = math.log1p %60 : vector<1x128xf32>
    %62 = arith.addf %56, %61 : vector<1x128xf32>
    %63 = tpu.iota {dimensions = array<i32: 1>} : vector<1x128xi32>
    %c16_i32_39 = arith.constant 16 : i32
    %64 = vector.broadcast %c16_i32_39 : i32 to vector<1x128xi32>
    %65 = arith.cmpi slt, %63, %64 : vector<1x128xi32>
    %cst_40 = arith.constant 0.000000e+00 : f32
    %66 = vector.broadcast %cst_40 : f32 to vector<1x128xf32>
    %67 = arith.select %65, %62, %66 : vector<1x128xi1>, vector<1x128xf32>
    %68 = vector.shape_cast %67 : vector<1x128xf32> to vector<1x1x128xf32>
    %cst_41 = arith.constant dense<0.000000e+00> : vector<1xf32>
    %69 = vector.multi_reduction <add>, %68, %cst_41 [1, 2] : vector<1x1x128xf32> to vector<1xf32>
    %70 = vector.shape_cast %69 : vector<1xf32> to vector<1x1x1xf32>
    %71 = vector.extract %70[0, 0, 0] : f32 from vector<1x1x1xf32>
    %72 = arith.addf %50, %71 : f32
    %73 = vector.broadcast %72 : f32 to vector<1x1xf32>
    %c0_42 = arith.constant 0 : index
    %c0_43 = arith.constant 0 : index
    %74 = vector.load %arg11[%c0_42, %c0_43] : memref<1x1xf32, #tpu.memory_space<vmem>>, vector<1x1xf32>
    tpu.vector_store %arg11[%c0_42, %c0_43], %73 {strides = array<i32>} : memref<1x1xf32, #tpu.memory_space<vmem>>, vector<1x1xf32>,
    return
  }
  func.func @transform_0(%arg0: i32, %arg1: memref<128xi32, #tpu.memory_space<smem>>, %arg2: memref<128xi32, #tpu.memory_space<smem>>, %arg3: memref<128xi32, #tpu.memory_space<smem>>, %arg4: memref<128xi32, #tpu.memory_space<smem>>) -> (i32, i32) {
    %c0_i32 = arith.constant 0 : i32
    %c0_i32_0 = arith.constant 0 : i32
    %c0_i32_1 = arith.constant 0 : i32
    return %c0_i32, %c0_i32_0 : i32, i32
  }
  func.func @transform_1(%arg0: i32, %arg1: memref<128xi32, #tpu.memory_space<smem>>, %arg2: memref<128xi32, #tpu.memory_space<smem>>, %arg3: memref<128xi32, #tpu.memory_space<smem>>, %arg4: memref<128xi32, #tpu.memory_space<smem>>) -> (i32, i32) {
    %c0_i32 = arith.constant 0 : i32
    %c0_i32_0 = arith.constant 0 : i32
    %c0_i32_1 = arith.constant 0 : i32
    return %c0_i32, %c0_i32_0 : i32, i32
  }
  func.func @transform_2(%arg0: i32, %arg1: memref<128xi32, #tpu.memory_space<smem>>, %arg2: memref<128xi32, #tpu.memory_space<smem>>, %arg3: memref<128xi32, #tpu.memory_space<smem>>, %arg4: memref<128xi32, #tpu.memory_space<smem>>) -> (i32, i32) {
    %c0_i32 = arith.constant 0 : i32
    %c0_i32_0 = arith.constant 0 : i32
    %c0_i32_1 = arith.constant 0 : i32
    return %c0_i32, %c0_i32_0 : i32, i32
  }
  func.func @transform_3(%arg0: i32, %arg1: memref<128xi32, #tpu.memory_space<smem>>, %arg2: memref<128xi32, #tpu.memory_space<smem>>, %arg3: memref<128xi32, #tpu.memory_space<smem>>, %arg4: memref<128xi32, #tpu.memory_space<smem>>) -> (i32, i32) {
    %c0_i32 = arith.constant 0 : i32
    %c0_i32_0 = arith.constant 0 : i32
    %c0_i32_1 = arith.constant 0 : i32
    return %c0_i32, %c0_i32_0 : i32, i32
  }
  func.func @transform_4(%arg0: i32, %arg1: memref<128xi32, #tpu.memory_space<smem>>, %arg2: memref<128xi32, #tpu.memory_space<smem>>, %arg3: memref<128xi32, #tpu.memory_space<smem>>, %arg4: memref<128xi32, #tpu.memory_space<smem>>) -> (i32, i32) {
    %c0_i32 = arith.constant 0 : i32
    %c0_i32_0 = arith.constant 0 : i32
    %c0_i32_1 = arith.constant 0 : i32
    return %c0_i32, %c0_i32_0 : i32, i32
  }
  func.func @transform_5(%arg0: i32, %arg1: memref<128xi32, #tpu.memory_space<smem>>, %arg2: memref<128xi32, #tpu.memory_space<smem>>, %arg3: memref<128xi32, #tpu.memory_space<smem>>, %arg4: memref<128xi32, #tpu.memory_space<smem>>) -> (i32, i32) {
    %c0_i32 = arith.constant 0 : i32
    %c0_i32_0 = arith.constant 0 : i32
    %c0_i32_1 = arith.constant 0 : i32
    return %c0_i32, %c0_i32_0 : i32, i32
  }
  func.func @transform_6(%arg0: i32, %arg1: memref<128xi32, #tpu.memory_space<smem>>, %arg2: memref<128xi32, #tpu.memory_space<smem>>, %arg3: memref<128xi32, #tpu.memory_space<smem>>, %arg4: memref<128xi32, #tpu.memory_space<smem>>) -> (i32, i32) {
    %c0_i32 = arith.constant 0 : i32
    %c0_i32_0 = arith.constant 0 : i32
    %c0_i32_1 = arith.constant 0 : i32
    return %c0_i32, %c0_i32_0 : i32, i32
  }
}

</mosaic_0001>

<llo_original>
// kernel: tpu_custom_call.1
$region0: #{tpu_custom_call.1}
  #allocation0 [shape = 'u32[]', space=smem, size = 0x4, offset = 0x4, fixed_abs, tag = 'smem constant byte address 0x4 - core index']
  #allocation1 [shape = 'u32[144,128]{1,0:T(1,128)}', space=vmem, size = 0x12000, scoped, tag = 'internal scratch']
  #allocation2 [shape = 'f32[128,33]{1,0:T(8,128)}', space=vmem, size = 0x10000, scoped, tag = 'scratch operand']
  #allocation3 [shape = 'f32[128,33]{1,0:T(8,128)}', space=vmem, size = 0x10000, scoped, tag = 'scratch operand']
  #allocation4 [shape = 'f32[128,33]{1,0:T(8,128)}', space=vmem, size = 0x10000, scoped, tag = 'scratch operand']
  #allocation5 [shape = 'f32[128,9]{1,0:T(8,128)}', space=vmem, size = 0x10000, scoped, tag = 'scratch operand']
  #allocation6 [shape = 's32[1]{0}', space=sflag, size = 0x4, scoped, tag = 'scoped memory for tpu_custom_call.1']
  #allocation7 [shape = 'u8[512]{0}', space=smem, size = 0x200, scoped, tag = 'prefetched SMEM operand 0']
  #allocation8 [shape = 'u8[512]{0}', space=smem, size = 0x200, scoped, tag = 'prefetched SMEM operand 1']
  #allocation9 [shape = 'u8[512]{0}', space=smem, size = 0x200, scoped, tag = 'prefetched SMEM operand 2']
  #allocation10 [shape = 'u8[512]{0}', space=smem, size = 0x200, scoped, tag = 'prefetched SMEM operand 3']
  %s0 = inlined_call_operand.vmem [shape: s32[128], index: 0, kind: input, shape index: {}]
  %s1 = inlined_call_operand.vmem [shape: s32[128], index: 1, kind: input, shape index: {}]
  %s2 = inlined_call_operand.vmem [shape: s32[128], index: 2, kind: input, shape index: {}]
  %s3 = inlined_call_operand.vmem [shape: s32[128], index: 3, kind: input, shape index: {}]
  %s4 = inlined_call_operand.vmem [shape: f32[1,128], index: 4, kind: input, shape index: {}]
  %s5 = inlined_call_operand.vmem [shape: f32[1,128], index: 5, kind: input, shape index: {}]
  %s6 = inlined_call_operand.vmem [shape: f32[16,32], index: 6, kind: input, shape index: {}]
  %s7 = inlined_call_operand.vmem [shape: f32[50,33], index: 7, kind: input, shape index: {}]
  %s8 = inlined_call_operand.vmem [shape: f32[20,9], index: 8, kind: input, shape index: {}]
  %s9 = inlined_call_operand.hbm [shape: f32[1,128], index: 9, kind: output, shape index: {0}]
  %s10 = inlined_call_operand.hbm [shape: f32[1,1], index: 10, kind: output, shape index: {1}]
  %11 = xla_tuple %s9, %s10
  %s12 = sld [smem:[#allocation0]]
  $region52: #{tpu_custom_call.1} parent=0
    _
  %s14 = ssub.s32 1, %s12
  %s15 = scalar_select 0, %s14, %s12
  %s16 = sshll.u32 %s0, 4
  %s17 = int_to_ptr.vmem [resolvable:$true] %s16
  %19 = dma.vmem_to_smem %s17, 16, [#allocation7], [#allocation6]
  %s20 = sshll.u32 %s1, 4
  %s21 = int_to_ptr.vmem [resolvable:$true] %s20
  %23 = dma.vmem_to_smem %s21, 16, [#allocation8], [#allocation6]
  %s24 = sshll.u32 %s2, 4
  %s25 = int_to_ptr.vmem [resolvable:$true] %s24
  %27 = dma.vmem_to_smem %s25, 16, [#allocation9], [#allocation6]
  %s28 = sshll.u32 %s3, 4
  %s29 = int_to_ptr.vmem [resolvable:$true] %s28
  %31 = dma.vmem_to_smem %s29, 16, [#allocation10], [#allocation6]
  %32 = dma.done [#allocation6], 64
  %33 = sfence
  $region1: #{tpu_custom_call.1} parent=0
    #allocation11 [shape = 'u8[512]{0}', space=vmem, size = 0x400, scoped, tag = 'output window, operand 0, single buffered']
    #allocation12 [shape = 's32[1]{0}', space=sflag, size = 0x4, scoped, tag = 'scoped memory for tpu_custom_call.1']
    #allocation13 [shape = 'u8[512]{0}', space=vmem, size = 0x400, scoped, tag = 'output window, operand 1, single buffered']
    #allocation14 [shape = 's32[1]{0}', space=sflag, size = 0x4, scoped, tag = 'scoped memory for tpu_custom_call.1']
    %34 = vsyncpa [#allocation12], 0
    %35 = vsyncpa [#allocation14], 0
    // Predicated region
    $region2: #{tpu_custom_call.1} parent=1 // pred_check
      _
    $region3: #{tpu_custom_call.1} parent=1 // pred_check_branch
      %37 = sbr.rel (0) target = $region5
    $region4: #{tpu_custom_call.1} parent=1 // pred_region
      _
    $region5: #{tpu_custom_call.1} parent=1 // pred_fallthru
      _
    // Predicated region
    $region6: #{tpu_custom_call.1} parent=1 // pred_check
      _
    $region7: #{tpu_custom_call.1} parent=1 // pred_check_branch
      %39 = sbr.rel (0) target = $region9
    $region8: #{tpu_custom_call.1} parent=1 // pred_region
      _
    $region9: #{tpu_custom_call.1} parent=1 // pred_fallthru
      _
    // Predicated region
    $region10: #{tpu_custom_call.1} parent=1 // pred_check
      _
    $region11: #{tpu_custom_call.1} parent=1 // pred_check_branch
      %41 = sbr.rel (0) target = $region13
    $region12: #{tpu_custom_call.1} parent=1 // pred_region
      _
    $region13: #{tpu_custom_call.1} parent=1 // pred_fallthru
      _
    // Predicated region
    $region14: #{tpu_custom_call.1} parent=1 // pred_check
      _
    $region15: #{tpu_custom_call.1} parent=1 // pred_check_branch
      %43 = sbr.rel (0) target = $region17
    $region16: #{tpu_custom_call.1} parent=1 // pred_region
      _
    $region17: #{tpu_custom_call.1} parent=1 // pred_fallthru
      _
    // Predicated region
    $region18: #{tpu_custom_call.1} parent=1 // pred_check
      _
    $region19: #{tpu_custom_call.1} parent=1 // pred_check_branch
      %45 = sbr.rel (0) target = $region21
    $region20: #{tpu_custom_call.1} parent=1 // pred_region
      _
    $region21: #{tpu_custom_call.1} parent=1 // pred_fallthru
      _
    %v46 = vlaneseq
    %v47 = vand.u32 %v46, 127
    %vm48 = vcmp.eq.s32.totalorder %v47, 32
    %v49 = vsel %vm48, 1.0, 0.0
    %vm50 = vcmask 269312
    %51 = vst.msk [vmem:[#allocation2] sm:$0xff] %vm50, %v49
    %52 = vst.msk [vmem:[#allocation2 + $0x8] sm:$0xff] %vm50, %v49
    %53 = vst.msk [vmem:[#allocation2 + $0x10] sm:$0xff] %vm50, %v49
    %54 = vst.msk [vmem:[#allocation2 + $0x18] sm:$0xff] %vm50, %v49
    %55 = vst.msk [vmem:[#allocation2 + $0x20] sm:$0xff] %vm50, %v49
    %56 = vst.msk [vmem:[#allocation2 + $0x28] sm:$0xff] %vm50, %v49
    %57 = vst.msk [vmem:[#allocation2 + $0x30] sm:$0xff] %vm50, %v49
    %58 = vst.msk [vmem:[#allocation2 + $0x38] sm:$0xff] %vm50, %v49
    %59 = vst.msk [vmem:[#allocation2 + $0x40] sm:$0xff] %vm50, %v49
    %60 = vst.msk [vmem:[#allocation2 + $0x48] sm:$0xff] %vm50, %v49
    %61 = vst.msk [vmem:[#allocation2 + $0x50] sm:$0xff] %vm50, %v49
    %62 = vst.msk [vmem:[#allocation2 + $0x58] sm:$0xff] %vm50, %v49
    %63 = vst.msk [vmem:[#allocation2 + $0x60] sm:$0xff] %vm50, %v49
    %64 = vst.msk [vmem:[#allocation2 + $0x68] sm:$0xff] %vm50, %v49
    %65 = vst.msk [vmem:[#allocation2 + $0x70] sm:$0xff] %vm50, %v49
    %66 = vst.msk [vmem:[#allocation2 + $0x78] sm:$0xff] %vm50, %v49
    %67 = vst.msk [vmem:[#allocation4] sm:$0xff] %vm50, %v49
    %68 = vst.msk [vmem:[#allocation4 + $0x8] sm:$0xff] %vm50, %v49
    %69 = vst.msk [vmem:[#allocation4 + $0x10] sm:$0xff] %vm50, %v49
    %70 = vst.msk [vmem:[#allocation4 + $0x18] sm:$0xff] %vm50, %v49
    %71 = vst.msk [vmem:[#allocation4 + $0x20] sm:$0xff] %vm50, %v49
    %72 = vst.msk [vmem:[#allocation4 + $0x28] sm:$0xff] %vm50, %v49
    %73 = vst.msk [vmem:[#allocation4 + $0x30] sm:$0xff] %vm50, %v49
    %74 = vst.msk [vmem:[#allocation4 + $0x38] sm:$0xff] %vm50, %v49
    %75 = vst.msk [vmem:[#allocation4 + $0x40] sm:$0xff] %vm50, %v49
    %76 = vst.msk [vmem:[#allocation4 + $0x48] sm:$0xff] %vm50, %v49
    %77 = vst.msk [vmem:[#allocation4 + $0x50] sm:$0xff] %vm50, %v49
    %78 = vst.msk [vmem:[#allocation4 + $0x58] sm:$0xff] %vm50, %v49
    %79 = vst.msk [vmem:[#allocation4 + $0x60] sm:$0xff] %vm50, %v49
    %80 = vst.msk [vmem:[#allocation4 + $0x68] sm:$0xff] %vm50, %v49
    %81 = vst.msk [vmem:[#allocation4 + $0x70] sm:$0xff] %vm50, %v49
    %82 = vst.msk [vmem:[#allocation4 + $0x78] sm:$0xff] %vm50, %v49
    %83 = vst.msk [vmem:[#allocation3] sm:$0xff] %vm50, 0.0
    %84 = vst.msk [vmem:[#allocation3 + $0x8] sm:$0xff] %vm50, 0.0
    %85 = vst.msk [vmem:[#allocation3 + $0x10] sm:$0xff] %vm50, 0.0
    %86 = vst.msk [vmem:[#allocation3 + $0x18] sm:$0xff] %vm50, 0.0
    %87 = vst.msk [vmem:[#allocation3 + $0x20] sm:$0xff] %vm50, 0.0
    %88 = vst.msk [vmem:[#allocation3 + $0x28] sm:$0xff] %vm50, 0.0
    %89 = vst.msk [vmem:[#allocation3 + $0x30] sm:$0xff] %vm50, 0.0
    %90 = vst.msk [vmem:[#allocation3 + $0x38] sm:$0xff] %vm50, 0.0
    %91 = vst.msk [vmem:[#allocation3 + $0x40] sm:$0xff] %vm50, 0.0
    %92 = vst.msk [vmem:[#allocation3 + $0x48] sm:$0xff] %vm50, 0.0
    %93 = vst.msk [vmem:[#allocation3 + $0x50] sm:$0xff] %vm50, 0.0
    %94 = vst.msk [vmem:[#allocation3 + $0x58] sm:$0xff] %vm50, 0.0
    %95 = vst.msk [vmem:[#allocation3 + $0x60] sm:$0xff] %vm50, 0.0
    %96 = vst.msk [vmem:[#allocation3 + $0x68] sm:$0xff] %vm50, 0.0
    %97 = vst.msk [vmem:[#allocation3 + $0x70] sm:$0xff] %vm50, 0.0
    %98 = vst.msk [vmem:[#allocation3 + $0x78] sm:$0xff] %vm50, 0.0
    %vm99 = vcmask 72704
    %100 = vst.msk [vmem:[#allocation5] sm:$0xff] %vm99, 0.0
    %101 = vst.msk [vmem:[#allocation5 + $0x8] sm:$0xff] %vm99, 0.0
    %102 = vst.msk [vmem:[#allocation5 + $0x10] sm:$0xff] %vm99, 0.0
    %103 = vst.msk [vmem:[#allocation5 + $0x18] sm:$0xff] %vm99, 0.0
    %104 = vst.msk [vmem:[#allocation5 + $0x20] sm:$0xff] %vm99, 0.0
    %105 = vst.msk [vmem:[#allocation5 + $0x28] sm:$0xff] %vm99, 0.0
    %106 = vst.msk [vmem:[#allocation5 + $0x30] sm:$0xff] %vm99, 0.0
    %107 = vst.msk [vmem:[#allocation5 + $0x38] sm:$0xff] %vm99, 0.0
    %108 = vst.msk [vmem:[#allocation5 + $0x40] sm:$0xff] %vm99, 0.0
    %109 = vst.msk [vmem:[#allocation5 + $0x48] sm:$0xff] %vm99, 0.0
    %110 = vst.msk [vmem:[#allocation5 + $0x50] sm:$0xff] %vm99, 0.0
    %111 = vst.msk [vmem:[#allocation5 + $0x58] sm:$0xff] %vm99, 0.0
    %112 = vst.msk [vmem:[#allocation5 + $0x60] sm:$0xff] %vm99, 0.0
    %113 = vst.msk [vmem:[#allocation5 + $0x68] sm:$0xff] %vm99, 0.0
    %114 = vst.msk [vmem:[#allocation5 + $0x70] sm:$0xff] %vm99, 0.0
    %115 = vst.msk [vmem:[#allocation5 + $0x78] sm:$0xff] %vm99, 0.0
    loop: start=0, step=1, limit=24
    $region22: #{tpu_custom_call.1} parent=1 // loop_pre_header
      _
    $region23: #{tpu_custom_call.1} parent=1 // loop_header
      %s117 = sphi 0, %s121
      %p118 = scmp.ge.s32.totalorder %s117, 24
    $region24: #{tpu_custom_call.1} parent=1 // loop_header_branch
      %120 = sbr.rel (%p118) target = $region28
    $region25: #{tpu_custom_call.1} parent=1 // loop_body
      %s122 = sld [smem:[#allocation7 + %s117]]
      %s123 = sld [smem:[#allocation8 + %s117]]
      %s124 = scalar_lea.vmem %s6, %s122
      %v125 = vld [vmem:[%s124] sm:$0x1]
      %s126 = scalar_lea.vmem [#allocation2], %s117
      %vm127 = vcmask 253952
      %128 = vst.msk [vmem:[%s126] sm:$0x1] %vm127, %v125
      %s129 = scalar_lea.vmem %s7, %s123
      %v130 = vld [vmem:[%s129] sm:$0x1]
      %s131 = scalar_lea.vmem [#allocation3], %s117
      %vm132 = vcmask 262144
      %133 = vst.msk [vmem:[%s131] sm:$0x1] %vm132, %v130
    $region26: #{tpu_custom_call.1} parent=1 // loop_footer
      %s121 = sadd.s32 1, %s117
    $region27: #{tpu_custom_call.1} parent=1 // loop_footer_branch
      %116 = sbr.rel target = $region23
    $region28: #{tpu_custom_call.1} parent=1 // loop_exit
      _
    loop: start=0, step=1, limit=16
    $region29: #{tpu_custom_call.1} parent=1 // loop_pre_header
      _
    $region30: #{tpu_custom_call.1} parent=1 // loop_header
      %s135 = sphi 0, %s139
      %p136 = scmp.ge.s32.totalorder %s135, 16
    $region31: #{tpu_custom_call.1} parent=1 // loop_header_branch
      %138 = sbr.rel (%p136) target = $region35
    $region32: #{tpu_custom_call.1} parent=1 // loop_body
      %s140 = sld [smem:[#allocation9 + %s135]]
      %s141 = sld [smem:[#allocation10 + %s135]]
      %s142 = scalar_lea.vmem %s6, %s140
      %v143 = vld [vmem:[%s142] sm:$0x1]
      %s144 = scalar_lea.vmem [#allocation4], %s135
      %vm145 = vcmask 253952
      %146 = vst.msk [vmem:[%s144] sm:$0x1] %vm145, %v143
      %s147 = scalar_lea.vmem %s8, %s141
      %v148 = vld [vmem:[%s147] sm:$0x1]
      %s149 = scalar_lea.vmem [#allocation5], %s135
      %vm150 = vcmask 65536
      %151 = vst.msk [vmem:[%s149] sm:$0x1] %vm150, %v148
    $region33: #{tpu_custom_call.1} parent=1 // loop_footer
      %s139 = sadd.s32 1, %s135
    $region34: #{tpu_custom_call.1} parent=1 // loop_footer_branch
      %134 = sbr.rel target = $region30
    $region35: #{tpu_custom_call.1} parent=1 // loop_exit
      _
    %v152 = vld [vmem:[#allocation2] sm:$0xff]
    %v153 = vld [vmem:[#allocation2 + $0x8] sm:$0xff]
    %v154 = vld [vmem:[#allocation2 + $0x10] sm:$0xff]
    %v155 = vld [vmem:[#allocation2 + $0x18] sm:$0xff]
    %v156 = vld [vmem:[#allocation2 + $0x20] sm:$0xff]
    %v157 = vld [vmem:[#allocation2 + $0x28] sm:$0xff]
    %v158 = vld [vmem:[#allocation2 + $0x30] sm:$0xff]
    %v159 = vld [vmem:[#allocation2 + $0x38] sm:$0xff]
    %v160 = vld [vmem:[#allocation2 + $0x40] sm:$0xff]
    %v161 = vld [vmem:[#allocation2 + $0x48] sm:$0xff]
    %v162 = vld [vmem:[#allocation2 + $0x50] sm:$0xff]
    %v163 = vld [vmem:[#allocation2 + $0x58] sm:$0xff]
    %v164 = vld [vmem:[#allocation2 + $0x60] sm:$0xff]
    %v165 = vld [vmem:[#allocation2 + $0x68] sm:$0xff]
    %v166 = vld [vmem:[#allocation2 + $0x70] sm:$0xff]
    %v167 = vld [vmem:[#allocation2 + $0x78] sm:$0xff]
    %v168 = vld [vmem:[#allocation3] sm:$0xff]
    %v169 = vld [vmem:[#allocation3 + $0x8] sm:$0xff]
    %v170 = vld [vmem:[#allocation3 + $0x10] sm:$0xff]
    %v171 = vld [vmem:[#allocation3 + $0x18] sm:$0xff]
    %v172 = vld [vmem:[#allocation3 + $0x20] sm:$0xff]
    %v173 = vld [vmem:[#allocation3 + $0x28] sm:$0xff]
    %v174 = vld [vmem:[#allocation3 + $0x30] sm:$0xff]
    %v175 = vld [vmem:[#allocation3 + $0x38] sm:$0xff]
    %v176 = vld [vmem:[#allocation3 + $0x40] sm:$0xff]
    %v177 = vld [vmem:[#allocation3 + $0x48] sm:$0xff]
    %v178 = vld [vmem:[#allocation3 + $0x50] sm:$0xff]
    %v179 = vld [vmem:[#allocation3 + $0x58] sm:$0xff]
    %v180 = vld [vmem:[#allocation3 + $0x60] sm:$0xff]
    %v181 = vld [vmem:[#allocation3 + $0x68] sm:$0xff]
    %v182 = vld [vmem:[#allocation3 + $0x70] sm:$0xff]
    %v183 = vld [vmem:[#allocation3 + $0x78] sm:$0xff]
    %v184 = vmul.f32 %v152, %v168
    %v185 = vmul.f32 %v153, %v169
    %v186 = vmul.f32 %v154, %v170
    %v187 = vmul.f32 %v155, %v171
    %v188 = vmul.f32 %v156, %v172
    %v189 = vmul.f32 %v157, %v173
    %v190 = vmul.f32 %v158, %v174
    %v191 = vmul.f32 %v159, %v175
    %v192 = vmul.f32 %v160, %v176
    %v193 = vmul.f32 %v161, %v177
    %v194 = vmul.f32 %v162, %v178
    %v195 = vmul.f32 %v163, %v179
    %v196 = vmul.f32 %v164, %v180
    %v197 = vmul.f32 %v165, %v181
    %v198 = vmul.f32 %v166, %v182
    %v199 = vmul.f32 %v167, %v183
    %v200 = vsel %vm50, %v184, 0.0
    %201 = vadd.xlane.f32.xlu0 %v200
    %v202 = vpop.xlane.xlu0 %201
    %v203 = vsel %vm50, %v185, 0.0
    %204 = vadd.xlane.f32.xlu0 %v203
    %v205 = vpop.xlane.xlu0 %204
    %v206 = vsel %vm50, %v186, 0.0
    %207 = vadd.xlane.f32.xlu0 %v206
    %v208 = vpop.xlane.xlu0 %207
    %v209 = vsel %vm50, %v187, 0.0
    %210 = vadd.xlane.f32.xlu0 %v209
    %v211 = vpop.xlane.xlu0 %210
    %v212 = vsel %vm50, %v188, 0.0
    %213 = vadd.xlane.f32.xlu0 %v212
    %v214 = vpop.xlane.xlu0 %213
    %v215 = vsel %vm50, %v189, 0.0
    %216 = vadd.xlane.f32.xlu0 %v215
    %v217 = vpop.xlane.xlu0 %216
    %v218 = vsel %vm50, %v190, 0.0
    %219 = vadd.xlane.f32.xlu0 %v218
    %v220 = vpop.xlane.xlu0 %219
    %v221 = vsel %vm50, %v191, 0.0
    %222 = vadd.xlane.f32.xlu0 %v221
    %v223 = vpop.xlane.xlu0 %222
    %v224 = vsel %vm50, %v192, 0.0
    %225 = vadd.xlane.f32.xlu0 %v224
    %v226 = vpop.xlane.xlu0 %225
    %v227 = vsel %vm50, %v193, 0.0
    %228 = vadd.xlane.f32.xlu0 %v227
    %v229 = vpop.xlane.xlu0 %228
    %v230 = vsel %vm50, %v194, 0.0
    %231 = vadd.xlane.f32.xlu0 %v230
    %v232 = vpop.xlane.xlu0 %231
    %v233 = vsel %vm50, %v195, 0.0
    %234 = vadd.xlane.f32.xlu0 %v233
    %v235 = vpop.xlane.xlu0 %234
    %v236 = vsel %vm50, %v196, 0.0
    %237 = vadd.xlane.f32.xlu0 %v236
    %v238 = vpop.xlane.xlu0 %237
    %v239 = vsel %vm50, %v197, 0.0
    %240 = vadd.xlane.f32.xlu0 %v239
    %v241 = vpop.xlane.xlu0 %240
    %v242 = vsel %vm50, %v198, 0.0
    %243 = vadd.xlane.f32.xlu0 %v242
    %v244 = vpop.xlane.xlu0 %243
    %v245 = vsel %vm50, %v199, 0.0
    %246 = vadd.xlane.f32.xlu0 %v245
    %v247 = vpop.xlane.xlu0 %246
    %v248 = vld [vmem:[#allocation4] sm:$0xff]
    %v249 = vld [vmem:[#allocation4 + $0x8] sm:$0xff]
    %v250 = vld [vmem:[#allocation4 + $0x10] sm:$0xff]
    %v251 = vld [vmem:[#allocation4 + $0x18] sm:$0xff]
    %v252 = vld [vmem:[#allocation4 + $0x20] sm:$0xff]
    %v253 = vld [vmem:[#allocation4 + $0x28] sm:$0xff]
    %v254 = vld [vmem:[#allocation4 + $0x30] sm:$0xff]
    %v255 = vld [vmem:[#allocation4 + $0x38] sm:$0xff]
    %v256 = vld [vmem:[#allocation4 + $0x40] sm:$0xff]
    %v257 = vld [vmem:[#allocation4 + $0x48] sm:$0xff]
    %v258 = vld [vmem:[#allocation4 + $0x50] sm:$0xff]
    %v259 = vld [vmem:[#allocation4 + $0x58] sm:$0xff]
    %v260 = vld [vmem:[#allocation4 + $0x60] sm:$0xff]
    %v261 = vld [vmem:[#allocation4 + $0x68] sm:$0xff]
    %v262 = vld [vmem:[#allocation4 + $0x70] sm:$0xff]
    %v263 = vld [vmem:[#allocation4 + $0x78] sm:$0xff]
    %v264 = vld [vmem:[#allocation5] sm:$0xff]
    %v265 = vld [vmem:[#allocation5 + $0x8] sm:$0xff]
    %v266 = vld [vmem:[#allocation5 + $0x10] sm:$0xff]
    %v267 = vld [vmem:[#allocation5 + $0x18] sm:$0xff]
    %v268 = vld [vmem:[#allocation5 + $0x20] sm:$0xff]
    %v269 = vld [vmem:[#allocation5 + $0x28] sm:$0xff]
    %v270 = vld [vmem:[#allocation5 + $0x30] sm:$0xff]
    %v271 = vld [vmem:[#allocation5 + $0x38] sm:$0xff]
    %v272 = vld [vmem:[#allocation5 + $0x40] sm:$0xff]
    %v273 = vld [vmem:[#allocation5 + $0x48] sm:$0xff]
    %v274 = vld [vmem:[#allocation5 + $0x50] sm:$0xff]
    %v275 = vld [vmem:[#allocation5 + $0x58] sm:$0xff]
    %v276 = vld [vmem:[#allocation5 + $0x60] sm:$0xff]
    %v277 = vld [vmem:[#allocation5 + $0x68] sm:$0xff]
    %v278 = vld [vmem:[#allocation5 + $0x70] sm:$0xff]
    %v279 = vld [vmem:[#allocation5 + $0x78] sm:$0xff]
    %296 = vrot.lane.b32.xlu0 %v264, 24
    %v297 = vpop.permute.xlu0 %296
    %298 = vrot.lane.b32.xlu0 %v265, 24
    %v299 = vpop.permute.xlu0 %298
    %300 = vrot.lane.b32.xlu0 %v266, 24
    %v301 = vpop.permute.xlu0 %300
    %302 = vrot.lane.b32.xlu0 %v267, 24
    %v303 = vpop.permute.xlu0 %302
    %304 = vrot.lane.b32.xlu0 %v268, 24
    %v305 = vpop.permute.xlu0 %304
    %306 = vrot.lane.b32.xlu0 %v269, 24
    %v307 = vpop.permute.xlu0 %306
    %308 = vrot.lane.b32.xlu0 %v270, 24
    %v309 = vpop.permute.xlu0 %308
    %310 = vrot.lane.b32.xlu0 %v271, 24
    %v311 = vpop.permute.xlu0 %310
    %312 = vrot.lane.b32.xlu0 %v272, 24
    %v313 = vpop.permute.xlu0 %312
    %314 = vrot.lane.b32.xlu0 %v273, 24
    %v315 = vpop.permute.xlu0 %314
    %316 = vrot.lane.b32.xlu0 %v274, 24
    %v317 = vpop.permute.xlu0 %316
    %318 = vrot.lane.b32.xlu0 %v275, 24
    %v319 = vpop.permute.xlu0 %318
    %320 = vrot.lane.b32.xlu0 %v276, 24
    %v321 = vpop.permute.xlu0 %320
    %322 = vrot.lane.b32.xlu0 %v277, 24
    %v323 = vpop.permute.xlu0 %322
    %324 = vrot.lane.b32.xlu0 %v278, 24
    %v325 = vpop.permute.xlu0 %324
    %326 = vrot.lane.b32.xlu0 %v279, 24
    %v327 = vpop.permute.xlu0 %326
    %v344 = vmul.f32 %v248, %v297
    %v345 = vmul.f32 %v249, %v299
    %v346 = vmul.f32 %v250, %v301
    %v347 = vmul.f32 %v251, %v303
    %v348 = vmul.f32 %v252, %v305
    %v349 = vmul.f32 %v253, %v307
    %v350 = vmul.f32 %v254, %v309
    %v351 = vmul.f32 %v255, %v311
    %v352 = vmul.f32 %v256, %v313
    %v353 = vmul.f32 %v257, %v315
    %v354 = vmul.f32 %v258, %v317
    %v355 = vmul.f32 %v259, %v319
    %v356 = vmul.f32 %v260, %v321
    %v357 = vmul.f32 %v261, %v323
    %v358 = vmul.f32 %v262, %v325
    %v359 = vmul.f32 %v263, %v327
    %376 = vrot.lane.b32.xlu0 %v344, 104
    %v377 = vpop.permute.xlu0 %376
    %378 = vrot.lane.b32.xlu0 %v345, 104
    %v379 = vpop.permute.xlu0 %378
    %380 = vrot.lane.b32.xlu0 %v346, 104
    %v381 = vpop.permute.xlu0 %380
    %382 = vrot.lane.b32.xlu0 %v347, 104
    %v383 = vpop.permute.xlu0 %382
    %384 = vrot.lane.b32.xlu0 %v348, 104
    %v385 = vpop.permute.xlu0 %384
    %386 = vrot.lane.b32.xlu0 %v349, 104
    %v387 = vpop.permute.xlu0 %386
    %388 = vrot.lane.b32.xlu0 %v350, 104
    %v389 = vpop.permute.xlu0 %388
    %390 = vrot.lane.b32.xlu0 %v351, 104
    %v391 = vpop.permute.xlu0 %390
    %392 = vrot.lane.b32.xlu0 %v352, 104
    %v393 = vpop.permute.xlu0 %392
    %394 = vrot.lane.b32.xlu0 %v353, 104
    %v395 = vpop.permute.xlu0 %394
    %396 = vrot.lane.b32.xlu0 %v354, 104
    %v397 = vpop.permute.xlu0 %396
    %398 = vrot.lane.b32.xlu0 %v355, 104
    %v399 = vpop.permute.xlu0 %398
    %400 = vrot.lane.b32.xlu0 %v356, 104
    %v401 = vpop.permute.xlu0 %400
    %402 = vrot.lane.b32.xlu0 %v357, 104
    %v403 = vpop.permute.xlu0 %402
    %404 = vrot.lane.b32.xlu0 %v358, 104
    %v405 = vpop.permute.xlu0 %404
    %406 = vrot.lane.b32.xlu0 %v359, 104
    %v407 = vpop.permute.xlu0 %406
    %v424 = vsel %vm99, %v377, 0.0
    %425 = vadd.xlane.f32.xlu0 %v424
    %v426 = vpop.xlane.xlu0 %425
    %v427 = vsel %vm99, %v379, 0.0
    %428 = vadd.xlane.f32.xlu0 %v427
    %v429 = vpop.xlane.xlu0 %428
    %v430 = vsel %vm99, %v381, 0.0
    %431 = vadd.xlane.f32.xlu0 %v430
    %v432 = vpop.xlane.xlu0 %431
    %v433 = vsel %vm99, %v383, 0.0
    %434 = vadd.xlane.f32.xlu0 %v433
    %v435 = vpop.xlane.xlu0 %434
    %v436 = vsel %vm99, %v385, 0.0
    %437 = vadd.xlane.f32.xlu0 %v436
    %v438 = vpop.xlane.xlu0 %437
    %v439 = vsel %vm99, %v387, 0.0
    %440 = vadd.xlane.f32.xlu0 %v439
    %v441 = vpop.xlane.xlu0 %440
    %v442 = vsel %vm99, %v389, 0.0
    %443 = vadd.xlane.f32.xlu0 %v442
    %v444 = vpop.xlane.xlu0 %443
    %v445 = vsel %vm99, %v391, 0.0
    %446 = vadd.xlane.f32.xlu0 %v445
    %v447 = vpop.xlane.xlu0 %446
    %v448 = vsel %vm99, %v393, 0.0
    %449 = vadd.xlane.f32.xlu0 %v448
    %v450 = vpop.xlane.xlu0 %449
    %v451 = vsel %vm99, %v395, 0.0
    %452 = vadd.xlane.f32.xlu0 %v451
    %v453 = vpop.xlane.xlu0 %452
    %v454 = vsel %vm99, %v397, 0.0
    %455 = vadd.xlane.f32.xlu0 %v454
    %v456 = vpop.xlane.xlu0 %455
    %v457 = vsel %vm99, %v399, 0.0
    %458 = vadd.xlane.f32.xlu0 %v457
    %v459 = vpop.xlane.xlu0 %458
    %v460 = vsel %vm99, %v401, 0.0
    %461 = vadd.xlane.f32.xlu0 %v460
    %v462 = vpop.xlane.xlu0 %461
    %v463 = vsel %vm99, %v403, 0.0
    %464 = vadd.xlane.f32.xlu0 %v463
    %v465 = vpop.xlane.xlu0 %464
    %v466 = vsel %vm99, %v405, 0.0
    %467 = vadd.xlane.f32.xlu0 %v466
    %v468 = vpop.xlane.xlu0 %467
    %v469 = vsel %vm99, %v407, 0.0
    %470 = vadd.xlane.f32.xlu0 %v469
    %v471 = vpop.xlane.xlu0 %470
    %v488 = vlaneseq
    %v489 = vshrl.u32 %v488, 7
    %v490 = vsub.s32 %v47, %v489
    %v491 = vrot.slane %v202, %v490
    %v492 = vadd.s32 %v47, 4294967288
    %v493 = vlaneseq
    %v494 = vshrl.u32 %v493, 7
    %v495 = vsub.s32 %v492, %v494
    %v496 = vrot.slane %v205, %v495
    %vm497 = vcmask 130112
    %v498 = vsel %vm497, %v496, %v491
    %v499 = vadd.s32 %v47, 4294967280
    %v500 = vlaneseq
    %v501 = vshrl.u32 %v500, 7
    %v502 = vsub.s32 %v499, %v501
    %v503 = vrot.slane %v208, %v502
    %vm504 = vcmask 195712
    %v505 = vsel %vm504, %v503, %v498
    %v506 = vadd.s32 %v47, 4294967272
    %v507 = vlaneseq
    %v508 = vshrl.u32 %v507, 7
    %v509 = vsub.s32 %v506, %v508
    %v510 = vrot.slane %v211, %v509
    %vm511 = vcmask 261312
    %v512 = vsel %vm511, %v510, %v505
    %v513 = vadd.s32 %v47, 4294967264
    %v514 = vlaneseq
    %v515 = vshrl.u32 %v514, 7
    %v516 = vsub.s32 %v513, %v515
    %v517 = vrot.slane %v214, %v516
    %vm518 = vcmask 326912
    %v519 = vsel %vm518, %v517, %v512
    %v520 = vadd.s32 %v47, 4294967256
    %v521 = vlaneseq
    %v522 = vshrl.u32 %v521, 7
    %v523 = vsub.s32 %v520, %v522
    %v524 = vrot.slane %v217, %v523
    %vm525 = vcmask 392512
    %v526 = vsel %vm525, %v524, %v519
    %v527 = vadd.s32 %v47, 4294967248
    %v528 = vlaneseq
    %v529 = vshrl.u32 %v528, 7
    %v530 = vsub.s32 %v527, %v529
    %v531 = vrot.slane %v220, %v530
    %vm532 = vcmask 458112
    %v533 = vsel %vm532, %v531, %v526
    %v534 = vadd.s32 %v47, 4294967240
    %v535 = vlaneseq
    %v536 = vshrl.u32 %v535, 7
    %v537 = vsub.s32 %v534, %v536
    %v538 = vrot.slane %v223, %v537
    %vm539 = vcmask 523712
    %v540 = vsel %vm539, %v538, %v533
    %v541 = vadd.s32 %v47, 4294967232
    %v542 = vlaneseq
    %v543 = vshrl.u32 %v542, 7
    %v544 = vsub.s32 %v541, %v543
    %v545 = vrot.slane %v226, %v544
    %vm546 = vcmask 589312
    %v547 = vsel %vm546, %v545, %v540
    %v548 = vadd.s32 %v47, 4294967224
    %v549 = vlaneseq
    %v550 = vshrl.u32 %v549, 7
    %v551 = vsub.s32 %v548, %v550
    %v552 = vrot.slane %v229, %v551
    %vm553 = vcmask 654912
    %v554 = vsel %vm553, %v552, %v547
    %v555 = vadd.s32 %v47, 4294967216
    %v556 = vlaneseq
    %v557 = vshrl.u32 %v556, 7
    %v558 = vsub.s32 %v555, %v557
    %v559 = vrot.slane %v232, %v558
    %vm560 = vcmask 720512
    %v561 = vsel %vm560, %v559, %v554
    %v562 = vadd.s32 %v47, 4294967208
    %v563 = vlaneseq
    %v564 = vshrl.u32 %v563, 7
    %v565 = vsub.s32 %v562, %v564
    %v566 = vrot.slane %v235, %v565
    %vm567 = vcmask 786112
    %v568 = vsel %vm567, %v566, %v561
    %v569 = vadd.s32 %v47, 4294967200
    %v570 = vlaneseq
    %v571 = vshrl.u32 %v570, 7
    %v572 = vsub.s32 %v569, %v571
    %v573 = vrot.slane %v238, %v572
    %vm574 = vcmask 851712
    %v575 = vsel %vm574, %v573, %v568
    %v576 = vadd.s32 %v47, 4294967192
    %v577 = vlaneseq
    %v578 = vshrl.u32 %v577, 7
    %v579 = vsub.s32 %v576, %v578
    %v580 = vrot.slane %v241, %v579
    %vm581 = vcmask 917312
    %v582 = vsel %vm581, %v580, %v575
    %v583 = vadd.s32 %v47, 4294967184
    %v584 = vlaneseq
    %v585 = vshrl.u32 %v584, 7
    %v586 = vsub.s32 %v583, %v585
    %v587 = vrot.slane %v244, %v586
    %vm588 = vcmask 982912
    %v589 = vsel %vm588, %v587, %v582
    %v590 = vadd.s32 %v47, 4294967176
    %v591 = vlaneseq
    %v592 = vshrl.u32 %v591, 7
    %v593 = vsub.s32 %v590, %v592
    %v594 = vrot.slane %v247, %v593
    %vm595 = vcmask 1048512
    %v596 = vsel %vm595, %v594, %v589
    %598 = vst [vmem:[#allocation11] sm:$0x1] %v596
    %v599 = vld [vmem:[%s4] sm:$0x1]
    %v600 = vmax.f32 %v202, 0.0
    %v601 = vmax.f32 %v205, 0.0
    %v602 = vmax.f32 %v208, 0.0
    %v603 = vmax.f32 %v211, 0.0
    %v604 = vmax.f32 %v214, 0.0
    %v605 = vmax.f32 %v217, 0.0
    %v606 = vmax.f32 %v220, 0.0
    %v607 = vmax.f32 %v223, 0.0
    %v608 = vmax.f32 %v226, 0.0
    %v609 = vmax.f32 %v229, 0.0
    %v610 = vmax.f32 %v232, 0.0
    %v611 = vmax.f32 %v235, 0.0
    %v612 = vmax.f32 %v238, 0.0
    %v613 = vmax.f32 %v241, 0.0
    %v614 = vmax.f32 %v244, 0.0
    %v615 = vmax.f32 %v247, 0.0
    %v617 = vlaneseq
    %v618 = vshrl.u32 %v617, 7
    %v619 = vsub.s32 0, %v618
    %v620 = vrot.slane %v599, %v619
    %622 = vbcast.lane.b32.xlu0 %v620, 256
    %v623 = vpop.permute.xlu0 %622
    %s625 = sor.u32 256, 8
    %626 = vbcast.lane.b32.xlu0 %v620, %s625
    %v627 = vpop.permute.xlu0 %626
    %s629 = sor.u32 256, 16
    %630 = vbcast.lane.b32.xlu0 %v620, %s629
    %v631 = vpop.permute.xlu0 %630
    %s633 = sor.u32 256, 24
    %634 = vbcast.lane.b32.xlu0 %v620, %s633
    %v635 = vpop.permute.xlu0 %634
    %s637 = sor.u32 256, 32
    %638 = vbcast.lane.b32.xlu0 %v620, %s637
    %v639 = vpop.permute.xlu0 %638
    %s641 = sor.u32 256, 40
    %642 = vbcast.lane.b32.xlu0 %v620, %s641
    %v643 = vpop.permute.xlu0 %642
    %s645 = sor.u32 256, 48
    %646 = vbcast.lane.b32.xlu0 %v620, %s645
    %v647 = vpop.permute.xlu0 %646
    %s649 = sor.u32 256, 56
    %650 = vbcast.lane.b32.xlu0 %v620, %s649
    %v651 = vpop.permute.xlu0 %650
    %s653 = sor.u32 256, 64
    %654 = vbcast.lane.b32.xlu0 %v620, %s653
    %v655 = vpop.permute.xlu0 %654
    %s657 = sor.u32 256, 72
    %658 = vbcast.lane.b32.xlu0 %v620, %s657
    %v659 = vpop.permute.xlu0 %658
    %s661 = sor.u32 256, 80
    %662 = vbcast.lane.b32.xlu0 %v620, %s661
    %v663 = vpop.permute.xlu0 %662
    %s665 = sor.u32 256, 88
    %666 = vbcast.lane.b32.xlu0 %v620, %s665
    %v667 = vpop.permute.xlu0 %666
    %s669 = sor.u32 256, 96
    %670 = vbcast.lane.b32.xlu0 %v620, %s669
    %v671 = vpop.permute.xlu0 %670
    %s673 = sor.u32 256, 104
    %674 = vbcast.lane.b32.xlu0 %v620, %s673
    %v675 = vpop.permute.xlu0 %674
    %s677 = sor.u32 256, 112
    %678 = vbcast.lane.b32.xlu0 %v620, %s677
    %v679 = vpop.permute.xlu0 %678
    %s681 = sor.u32 256, 120
    %682 = vbcast.lane.b32.xlu0 %v620, %s681
    %v683 = vpop.permute.xlu0 %682
    %v700 = vmul.f32 %v202, %v623
    %v701 = vmul.f32 %v205, %v627
    %v702 = vmul.f32 %v208, %v631
    %v703 = vmul.f32 %v211, %v635
    %v704 = vmul.f32 %v214, %v639
    %v705 = vmul.f32 %v217, %v643
    %v706 = vmul.f32 %v220, %v647
    %v707 = vmul.f32 %v223, %v651
    %v708 = vmul.f32 %v226, %v655
    %v709 = vmul.f32 %v229, %v659
    %v710 = vmul.f32 %v232, %v663
    %v711 = vmul.f32 %v235, %v667
    %v712 = vmul.f32 %v238, %v671
    %v713 = vmul.f32 %v241, %v675
    %v714 = vmul.f32 %v244, %v679
    %v715 = vmul.f32 %v247, %v683
    %v716 = vsub.f32 %v600, %v700
    %v717 = vsub.f32 %v601, %v701
    %v718 = vsub.f32 %v602, %v702
    %v719 = vsub.f32 %v603, %v703
    %v720 = vsub.f32 %v604, %v704
    %v721 = vsub.f32 %v605, %v705
    %v722 = vsub.f32 %v606, %v706
    %v723 = vsub.f32 %v607, %v707
    %v724 = vsub.f32 %v608, %v708
    %v725 = vsub.f32 %v609, %v709
    %v726 = vsub.f32 %v610, %v710
    %v727 = vsub.f32 %v611, %v711
    %v728 = vsub.f32 %v612, %v712
    %v729 = vsub.f32 %v613, %v713
    %v730 = vsub.f32 %v614, %v714
    %v731 = vsub.f32 %v615, %v715
    %v732 = vand.u32 2147483647, %v202
    %v733 = vand.u32 2147483647, %v205
    %v734 = vand.u32 2147483647, %v208
    %v735 = vand.u32 2147483647, %v211
    %v736 = vand.u32 2147483647, %v214
    %v737 = vand.u32 2147483647, %v217
    %v738 = vand.u32 2147483647, %v220
    %v739 = vand.u32 2147483647, %v223
    %v740 = vand.u32 2147483647, %v226
    %v741 = vand.u32 2147483647, %v229
    %v742 = vand.u32 2147483647, %v232
    %v743 = vand.u32 2147483647, %v235
    %v744 = vand.u32 2147483647, %v238
    %v745 = vand.u32 2147483647, %v241
    %v746 = vand.u32 2147483647, %v244
    %v747 = vand.u32 2147483647, %v247
    %v748 = vsub.f32 0.0, %v732
    %v749 = vsub.f32 0.0, %v733
    %v750 = vsub.f32 0.0, %v734
    %v751 = vsub.f32 0.0, %v735
    %v752 = vsub.f32 0.0, %v736
    %v753 = vsub.f32 0.0, %v737
    %v754 = vsub.f32 0.0, %v738
    %v755 = vsub.f32 0.0, %v739
    %v756 = vsub.f32 0.0, %v740
    %v757 = vsub.f32 0.0, %v741
    %v758 = vsub.f32 0.0, %v742
    %v759 = vsub.f32 0.0, %v743
    %v760 = vsub.f32 0.0, %v744
    %v761 = vsub.f32 0.0, %v745
    %v762 = vsub.f32 0.0, %v746
    %v763 = vsub.f32 0.0, %v747
    %v764 = vmul.f32 %v748, 1.442695
    %v765 = vpow.pop %v764
    %v766 = vmul.f32 %v749, 1.442695
    %v767 = vpow.pop %v766
    %v768 = vmul.f32 %v750, 1.442695
    %v769 = vpow.pop %v768
    %v770 = vmul.f32 %v751, 1.442695
    %v771 = vpow.pop %v770
    %v772 = vmul.f32 %v752, 1.442695
    %v773 = vpow.pop %v772
    %v774 = vmul.f32 %v753, 1.442695
    %v775 = vpow.pop %v774
    %v776 = vmul.f32 %v754, 1.442695
    %v777 = vpow.pop %v776
    %v778 = vmul.f32 %v755, 1.442695
    %v779 = vpow.pop %v778
    %v780 = vmul.f32 %v756, 1.442695
    %v781 = vpow.pop %v780
    %v782 = vmul.f32 %v757, 1.442695
    %v783 = vpow.pop %v782
    %v784 = vmul.f32 %v758, 1.442695
    %v785 = vpow.pop %v784
    %v786 = vmul.f32 %v759, 1.442695
    %v787 = vpow.pop %v786
    %v788 = vmul.f32 %v760, 1.442695
    %v789 = vpow.pop %v788
    %v790 = vmul.f32 %v761, 1.442695
    %v791 = vpow.pop %v790
    %v792 = vmul.f32 %v762, 1.442695
    %v793 = vpow.pop %v792
    %v794 = vmul.f32 %v763, 1.442695
    %v795 = vpow.pop %v794
    %v796 = vadd.f32 %v765, 1.0
    %v797 = vlog2.pop %v796
    %v798 = vmul.f32 %v797, 0.6931472
    %v799 = vmul.f32 -0.5, %v765
    %v800 = vadd.f32 %v799, 1.0
    %v801 = vmul.f32 %v800, %v765
    %v802 = vand.u32 2147483647, %v765
    %vm803 = vcmp.lt.f32.partialorder %v802, 0.0004427343
    %v804 = vsel %vm803, %v801, %v798
    %v805 = vadd.f32 %v767, 1.0
    %v806 = vlog2.pop %v805
    %v807 = vmul.f32 %v806, 0.6931472
    %v808 = vmul.f32 -0.5, %v767
    %v809 = vadd.f32 %v808, 1.0
    %v810 = vmul.f32 %v809, %v767
    %v811 = vand.u32 2147483647, %v767
    %vm812 = vcmp.lt.f32.partialorder %v811, 0.0004427343
    %v813 = vsel %vm812, %v810, %v807
    %v814 = vadd.f32 %v769, 1.0
    %v815 = vlog2.pop %v814
    %v816 = vmul.f32 %v815, 0.6931472
    %v817 = vmul.f32 -0.5, %v769
    %v818 = vadd.f32 %v817, 1.0
    %v819 = vmul.f32 %v818, %v769
    %v820 = vand.u32 2147483647, %v769
    %vm821 = vcmp.lt.f32.partialorder %v820, 0.0004427343
    %v822 = vsel %vm821, %v819, %v816
    %v823 = vadd.f32 %v771, 1.0
    %v824 = vlog2.pop %v823
    %v825 = vmul.f32 %v824, 0.6931472
    %v826 = vmul.f32 -0.5, %v771
    %v827 = vadd.f32 %v826, 1.0
    %v828 = vmul.f32 %v827, %v771
    %v829 = vand.u32 2147483647, %v771
    %vm830 = vcmp.lt.f32.partialorder %v829, 0.0004427343
    %v831 = vsel %vm830, %v828, %v825
    %v832 = vadd.f32 %v773, 1.0
    %v833 = vlog2.pop %v832
    %v834 = vmul.f32 %v833, 0.6931472
    %v835 = vmul.f32 -0.5, %v773
    %v836 = vadd.f32 %v835, 1.0
    %v837 = vmul.f32 %v836, %v773
    %v838 = vand.u32 2147483647, %v773
    %vm839 = vcmp.lt.f32.partialorder %v838, 0.0004427343
    %v840 = vsel %vm839, %v837, %v834
    %v841 = vadd.f32 %v775, 1.0
    %v842 = vlog2.pop %v841
    %v843 = vmul.f32 %v842, 0.6931472
    %v844 = vmul.f32 -0.5, %v775
    %v845 = vadd.f32 %v844, 1.0
    %v846 = vmul.f32 %v845, %v775
    %v847 = vand.u32 2147483647, %v775
    %vm848 = vcmp.lt.f32.partialorder %v847, 0.0004427343
    %v849 = vsel %vm848, %v846, %v843
    %v850 = vadd.f32 %v777, 1.0
    %v851 = vlog2.pop %v850
    %v852 = vmul.f32 %v851, 0.6931472
    %v853 = vmul.f32 -0.5, %v777
    %v854 = vadd.f32 %v853, 1.0
    %v855 = vmul.f32 %v854, %v777
    %v856 = vand.u32 2147483647, %v777
    %vm857 = vcmp.lt.f32.partialorder %v856, 0.0004427343
    %v858 = vsel %vm857, %v855, %v852
    %v859 = vadd.f32 %v779, 1.0
    %v860 = vlog2.pop %v859
    %v861 = vmul.f32 %v860, 0.6931472
    %v862 = vmul.f32 -0.5, %v779
    %v863 = vadd.f32 %v862, 1.0
    %v864 = vmul.f32 %v863, %v779
    %v865 = vand.u32 2147483647, %v779
    %vm866 = vcmp.lt.f32.partialorder %v865, 0.0004427343
    %v867 = vsel %vm866, %v864, %v861
    %v868 = vadd.f32 %v781, 1.0
    %v869 = vlog2.pop %v868
    %v870 = vmul.f32 %v869, 0.6931472
    %v871 = vmul.f32 -0.5, %v781
    %v872 = vadd.f32 %v871, 1.0
    %v873 = vmul.f32 %v872, %v781
    %v874 = vand.u32 2147483647, %v781
    %vm875 = vcmp.lt.f32.partialorder %v874, 0.0004427343
    %v876 = vsel %vm875, %v873, %v870
    %v877 = vadd.f32 %v783, 1.0
    %v878 = vlog2.pop %v877
    %v879 = vmul.f32 %v878, 0.6931472
    %v880 = vmul.f32 -0.5, %v783
    %v881 = vadd.f32 %v880, 1.0
    %v882 = vmul.f32 %v881, %v783
    %v883 = vand.u32 2147483647, %v783
    %vm884 = vcmp.lt.f32.partialorder %v883, 0.0004427343
    %v885 = vsel %vm884, %v882, %v879
    %v886 = vadd.f32 %v785, 1.0
    %v887 = vlog2.pop %v886
    %v888 = vmul.f32 %v887, 0.6931472
    %v889 = vmul.f32 -0.5, %v785
    %v890 = vadd.f32 %v889, 1.0
    %v891 = vmul.f32 %v890, %v785
    %v892 = vand.u32 2147483647, %v785
    %vm893 = vcmp.lt.f32.partialorder %v892, 0.0004427343
    %v894 = vsel %vm893, %v891, %v888
    %v895 = vadd.f32 %v787, 1.0
    %v896 = vlog2.pop %v895
    %v897 = vmul.f32 %v896, 0.6931472
    %v898 = vmul.f32 -0.5, %v787
    %v899 = vadd.f32 %v898, 1.0
    %v900 = vmul.f32 %v899, %v787
    %v901 = vand.u32 2147483647, %v787
    %vm902 = vcmp.lt.f32.partialorder %v901, 0.0004427343
    %v903 = vsel %vm902, %v900, %v897
    %v904 = vadd.f32 %v789, 1.0
    %v905 = vlog2.pop %v904
    %v906 = vmul.f32 %v905, 0.6931472
    %v907 = vmul.f32 -0.5, %v789
    %v908 = vadd.f32 %v907, 1.0
    %v909 = vmul.f32 %v908, %v789
    %v910 = vand.u32 2147483647, %v789
    %vm911 = vcmp.lt.f32.partialorder %v910, 0.0004427343
    %v912 = vsel %vm911, %v909, %v906
    %v913 = vadd.f32 %v791, 1.0
    %v914 = vlog2.pop %v913
    %v915 = vmul.f32 %v914, 0.6931472
    %v916 = vmul.f32 -0.5, %v791
    %v917 = vadd.f32 %v916, 1.0
    %v918 = vmul.f32 %v917, %v791
    %v919 = vand.u32 2147483647, %v791
    %vm920 = vcmp.lt.f32.partialorder %v919, 0.0004427343
    %v921 = vsel %vm920, %v918, %v915
    %v922 = vadd.f32 %v793, 1.0
    %v923 = vlog2.pop %v922
    %v924 = vmul.f32 %v923, 0.6931472
    %v925 = vmul.f32 -0.5, %v793
    %v926 = vadd.f32 %v925, 1.0
    %v927 = vmul.f32 %v926, %v793
    %v928 = vand.u32 2147483647, %v793
    %vm929 = vcmp.lt.f32.partialorder %v928, 0.0004427343
    %v930 = vsel %vm929, %v927, %v924
    %v931 = vadd.f32 %v795, 1.0
    %v932 = vlog2.pop %v931
    %v933 = vmul.f32 %v932, 0.6931472
    %v934 = vmul.f32 -0.5, %v795
    %v935 = vadd.f32 %v934, 1.0
    %v936 = vmul.f32 %v935, %v795
    %v937 = vand.u32 2147483647, %v795
    %vm938 = vcmp.lt.f32.partialorder %v937, 0.0004427343
    %v939 = vsel %vm938, %v936, %v933
    %v940 = vadd.f32 %v716, %v804
    %v941 = vadd.f32 %v717, %v813
    %v942 = vadd.f32 %v718, %v822
    %v943 = vadd.f32 %v719, %v831
    %v944 = vadd.f32 %v720, %v840
    %v945 = vadd.f32 %v721, %v849
    %v946 = vadd.f32 %v722, %v858
    %v947 = vadd.f32 %v723, %v867
    %v948 = vadd.f32 %v724, %v876
    %v949 = vadd.f32 %v725, %v885
    %v950 = vadd.f32 %v726, %v894
    %v951 = vadd.f32 %v727, %v903
    %v952 = vadd.f32 %v728, %v912
    %v953 = vadd.f32 %v729, %v921
    %v954 = vadd.f32 %v730, %v930
    %v955 = vadd.f32 %v731, %v939
    %vm956 = vcmp.lt.s32.totalorder %v47, 24
    %973 = vset.pattern.permute.xlu0 0
    %974 = vperm.xlu0 %973, %v940
    %v975 = vpop.permute.xlu0 %974
    %976 = vset.pattern.permute.xlu0 0
    %977 = vperm.xlu0 %976, %v941
    %v978 = vpop.permute.xlu0 %977
    %979 = vset.pattern.permute.xlu0 0
    %980 = vperm.xlu0 %979, %v942
    %v981 = vpop.permute.xlu0 %980
    %982 = vset.pattern.permute.xlu0 0
    %983 = vperm.xlu0 %982, %v943
    %v984 = vpop.permute.xlu0 %983
    %985 = vset.pattern.permute.xlu0 0
    %986 = vperm.xlu0 %985, %v944
    %v987 = vpop.permute.xlu0 %986
    %988 = vset.pattern.permute.xlu0 0
    %989 = vperm.xlu0 %988, %v945
    %v990 = vpop.permute.xlu0 %989
    %991 = vset.pattern.permute.xlu0 0
    %992 = vperm.xlu0 %991, %v946
    %v993 = vpop.permute.xlu0 %992
    %994 = vset.pattern.permute.xlu0 0
    %995 = vperm.xlu0 %994, %v947
    %v996 = vpop.permute.xlu0 %995
    %997 = vset.pattern.permute.xlu0 0
    %998 = vperm.xlu0 %997, %v948
    %v999 = vpop.permute.xlu0 %998
    %1000 = vset.pattern.permute.xlu0 0
    %1001 = vperm.xlu0 %1000, %v949
    %v1002 = vpop.permute.xlu0 %1001
    %1003 = vset.pattern.permute.xlu0 0
    %1004 = vperm.xlu0 %1003, %v950
    %v1005 = vpop.permute.xlu0 %1004
    %1006 = vset.pattern.permute.xlu0 0
    %1007 = vperm.xlu0 %1006, %v951
    %v1008 = vpop.permute.xlu0 %1007
    %1009 = vset.pattern.permute.xlu0 0
    %1010 = vperm.xlu0 %1009, %v952
    %v1011 = vpop.permute.xlu0 %1010
    %1012 = vset.pattern.permute.xlu0 0
    %1013 = vperm.xlu0 %1012, %v953
    %v1014 = vpop.permute.xlu0 %1013
    %1015 = vset.pattern.permute.xlu0 0
    %1016 = vperm.xlu0 %1015, %v954
    %v1017 = vpop.permute.xlu0 %1016
    %1018 = vset.pattern.permute.xlu0 0
    %1019 = vperm.xlu0 %1018, %v955
    %v1020 = vpop.permute.xlu0 %1019
    %v1021 = vlaneseq
    %v1022 = vshrl.u32 %v1021, 7
    %v1023 = vsub.s32 %v47, %v1022
    %v1024 = vrot.slane %v975, %v1023
    %v1025 = vlaneseq
    %v1026 = vshrl.u32 %v1025, 7
    %v1027 = vsub.s32 %v492, %v1026
    %v1028 = vrot.slane %v978, %v1027
    %v1029 = vsel %vm497, %v1028, %v1024
    %v1030 = vlaneseq
    %v1031 = vshrl.u32 %v1030, 7
    %v1032 = vsub.s32 %v499, %v1031
    %v1033 = vrot.slane %v981, %v1032
    %v1034 = vsel %vm504, %v1033, %v1029
    %v1035 = vlaneseq
    %v1036 = vshrl.u32 %v1035, 7
    %v1037 = vsub.s32 %v506, %v1036
    %v1038 = vrot.slane %v984, %v1037
    %v1039 = vsel %vm511, %v1038, %v1034
    %v1040 = vlaneseq
    %v1041 = vshrl.u32 %v1040, 7
    %v1042 = vsub.s32 %v513, %v1041
    %v1043 = vrot.slane %v987, %v1042
    %v1044 = vsel %vm518, %v1043, %v1039
    %v1045 = vlaneseq
    %v1046 = vshrl.u32 %v1045, 7
    %v1047 = vsub.s32 %v520, %v1046
    %v1048 = vrot.slane %v990, %v1047
    %v1049 = vsel %vm525, %v1048, %v1044
    %v1050 = vlaneseq
    %v1051 = vshrl.u32 %v1050, 7
    %v1052 = vsub.s32 %v527, %v1051
    %v1053 = vrot.slane %v993, %v1052
    %v1054 = vsel %vm532, %v1053, %v1049
    %v1055 = vlaneseq
    %v1056 = vshrl.u32 %v1055, 7
    %v1057 = vsub.s32 %v534, %v1056
    %v1058 = vrot.slane %v996, %v1057
    %v1059 = vsel %vm539, %v1058, %v1054
    %v1060 = vlaneseq
    %v1061 = vshrl.u32 %v1060, 7
    %v1062 = vsub.s32 %v541, %v1061
    %v1063 = vrot.slane %v999, %v1062
    %v1064 = vsel %vm546, %v1063, %v1059
    %v1065 = vlaneseq
    %v1066 = vshrl.u32 %v1065, 7
    %v1067 = vsub.s32 %v548, %v1066
    %v1068 = vrot.slane %v1002, %v1067
    %v1069 = vsel %vm553, %v1068, %v1064
    %v1070 = vlaneseq
    %v1071 = vshrl.u32 %v1070, 7
    %v1072 = vsub.s32 %v555, %v1071
    %v1073 = vrot.slane %v1005, %v1072
    %v1074 = vsel %vm560, %v1073, %v1069
    %v1075 = vlaneseq
    %v1076 = vshrl.u32 %v1075, 7
    %v1077 = vsub.s32 %v562, %v1076
    %v1078 = vrot.slane %v1008, %v1077
    %v1079 = vsel %vm567, %v1078, %v1074
    %v1080 = vlaneseq
    %v1081 = vshrl.u32 %v1080, 7
    %v1082 = vsub.s32 %v569, %v1081
    %v1083 = vrot.slane %v1011, %v1082
    %v1084 = vsel %vm574, %v1083, %v1079
    %v1085 = vlaneseq
    %v1086 = vshrl.u32 %v1085, 7
    %v1087 = vsub.s32 %v576, %v1086
    %v1088 = vrot.slane %v1014, %v1087
    %v1089 = vsel %vm581, %v1088, %v1084
    %v1090 = vlaneseq
    %v1091 = vshrl.u32 %v1090, 7
    %v1092 = vsub.s32 %v583, %v1091
    %v1093 = vrot.slane %v1017, %v1092
    %v1094 = vsel %vm588, %v1093, %v1089
    %v1095 = vlaneseq
    %v1096 = vshrl.u32 %v1095, 7
    %v1097 = vsub.s32 %v590, %v1096
    %v1098 = vrot.slane %v1020, %v1097
    %v1099 = vsel %vm595, %v1098, %v1094
    %v1101 = vsel %vm956, %v1099, 0.0
    %vm1102 = vcmask 1040384
    %v1103 = vsel %vm1102, %v1101, 0.0
    %1104 = vadd.xlane.f32.xlu0 %v1103
    %v1105 = vpop.xlane.xlu0 %1104
    %v1106 = vrot.slane %v1105, 4
    %v1107 = vadd.f32 %v1105, %v1106
    %v1108 = vrot.slane %v1107, 2
    %v1109 = vadd.f32 %v1107, %v1108
    %v1110 = vrot.slane %v1109, 1
    %v1111 = vadd.f32 %v1109, %v1110
    %s1112 = vtos %v1111
    %v1113 = vld [vmem:[%s5] sm:$0x1]
    %v1114 = vmax.f32 %v426, 0.0
    %v1115 = vmax.f32 %v429, 0.0
    %v1116 = vmax.f32 %v432, 0.0
    %v1117 = vmax.f32 %v435, 0.0
    %v1118 = vmax.f32 %v438, 0.0
    %v1119 = vmax.f32 %v441, 0.0
    %v1120 = vmax.f32 %v444, 0.0
    %v1121 = vmax.f32 %v447, 0.0
    %v1122 = vmax.f32 %v450, 0.0
    %v1123 = vmax.f32 %v453, 0.0
    %v1124 = vmax.f32 %v456, 0.0
    %v1125 = vmax.f32 %v459, 0.0
    %v1126 = vmax.f32 %v462, 0.0
    %v1127 = vmax.f32 %v465, 0.0
    %v1128 = vmax.f32 %v468, 0.0
    %v1129 = vmax.f32 %v471, 0.0
    %v1131 = vlaneseq
    %v1132 = vshrl.u32 %v1131, 7
    %v1133 = vsub.s32 0, %v1132
    %v1134 = vrot.slane %v1113, %v1133
    %1136 = vbcast.lane.b32.xlu0 %v1134, 256
    %v1137 = vpop.permute.xlu0 %1136
    %s1139 = sor.u32 256, 8
    %1140 = vbcast.lane.b32.xlu0 %v1134, %s1139
    %v1141 = vpop.permute.xlu0 %1140
    %s1143 = sor.u32 256, 16
    %1144 = vbcast.lane.b32.xlu0 %v1134, %s1143
    %v1145 = vpop.permute.xlu0 %1144
    %s1147 = sor.u32 256, 24
    %1148 = vbcast.lane.b32.xlu0 %v1134, %s1147
    %v1149 = vpop.permute.xlu0 %1148
    %s1151 = sor.u32 256, 32
    %1152 = vbcast.lane.b32.xlu0 %v1134, %s1151
    %v1153 = vpop.permute.xlu0 %1152
    %s1155 = sor.u32 256, 40
    %1156 = vbcast.lane.b32.xlu0 %v1134, %s1155
    %v1157 = vpop.permute.xlu0 %1156
    %s1159 = sor.u32 256, 48
    %1160 = vbcast.lane.b32.xlu0 %v1134, %s1159
    %v1161 = vpop.permute.xlu0 %1160
    %s1163 = sor.u32 256, 56
    %1164 = vbcast.lane.b32.xlu0 %v1134, %s1163
    %v1165 = vpop.permute.xlu0 %1164
    %s1167 = sor.u32 256, 64
    %1168 = vbcast.lane.b32.xlu0 %v1134, %s1167
    %v1169 = vpop.permute.xlu0 %1168
    %s1171 = sor.u32 256, 72
    %1172 = vbcast.lane.b32.xlu0 %v1134, %s1171
    %v1173 = vpop.permute.xlu0 %1172
    %s1175 = sor.u32 256, 80
    %1176 = vbcast.lane.b32.xlu0 %v1134, %s1175
    %v1177 = vpop.permute.xlu0 %1176
    %s1179 = sor.u32 256, 88
    %1180 = vbcast.lane.b32.xlu0 %v1134, %s1179
    %v1181 = vpop.permute.xlu0 %1180
    %s1183 = sor.u32 256, 96
    %1184 = vbcast.lane.b32.xlu0 %v1134, %s1183
    %v1185 = vpop.permute.xlu0 %1184
    %s1187 = sor.u32 256, 104
    %1188 = vbcast.lane.b32.xlu0 %v1134, %s1187
    %v1189 = vpop.permute.xlu0 %1188
    %s1191 = sor.u32 256, 112
    %1192 = vbcast.lane.b32.xlu0 %v1134, %s1191
    %v1193 = vpop.permute.xlu0 %1192
    %s1195 = sor.u32 256, 120
    %1196 = vbcast.lane.b32.xlu0 %v1134, %s1195
    %v1197 = vpop.permute.xlu0 %1196
    %v1214 = vmul.f32 %v426, %v1137
    %v1215 = vmul.f32 %v429, %v1141
    %v1216 = vmul.f32 %v432, %v1145
    %v1217 = vmul.f32 %v435, %v1149
    %v1218 = vmul.f32 %v438, %v1153
    %v1219 = vmul.f32 %v441, %v1157
    %v1220 = vmul.f32 %v444, %v1161
    %v1221 = vmul.f32 %v447, %v1165
    %v1222 = vmul.f32 %v450, %v1169
    %v1223 = vmul.f32 %v453, %v1173
    %v1224 = vmul.f32 %v456, %v1177
    %v1225 = vmul.f32 %v459, %v1181
    %v1226 = vmul.f32 %v462, %v1185
    %v1227 = vmul.f32 %v465, %v1189
    %v1228 = vmul.f32 %v468, %v1193
    %v1229 = vmul.f32 %v471, %v1197
    %v1230 = vsub.f32 %v1114, %v1214
    %v1231 = vsub.f32 %v1115, %v1215
    %v1232 = vsub.f32 %v1116, %v1216
    %v1233 = vsub.f32 %v1117, %v1217
    %v1234 = vsub.f32 %v1118, %v1218
    %v1235 = vsub.f32 %v1119, %v1219
    %v1236 = vsub.f32 %v1120, %v1220
    %v1237 = vsub.f32 %v1121, %v1221
    %v1238 = vsub.f32 %v1122, %v1222
    %v1239 = vsub.f32 %v1123, %v1223
    %v1240 = vsub.f32 %v1124, %v1224
    %v1241 = vsub.f32 %v1125, %v1225
    %v1242 = vsub.f32 %v1126, %v1226
    %v1243 = vsub.f32 %v1127, %v1227
    %v1244 = vsub.f32 %v1128, %v1228
    %v1245 = vsub.f32 %v1129, %v1229
    %v1246 = vand.u32 2147483647, %v426
    %v1247 = vand.u32 2147483647, %v429
    %v1248 = vand.u32 2147483647, %v432
    %v1249 = vand.u32 2147483647, %v435
    %v1250 = vand.u32 2147483647, %v438
    %v1251 = vand.u32 2147483647, %v441
    %v1252 = vand.u32 2147483647, %v444
    %v1253 = vand.u32 2147483647, %v447
    %v1254 = vand.u32 2147483647, %v450
    %v1255 = vand.u32 2147483647, %v453
    %v1256 = vand.u32 2147483647, %v456
    %v1257 = vand.u32 2147483647, %v459
    %v1258 = vand.u32 2147483647, %v462
    %v1259 = vand.u32 2147483647, %v465
    %v1260 = vand.u32 2147483647, %v468
    %v1261 = vand.u32 2147483647, %v471
    %v1262 = vsub.f32 0.0, %v1246
    %v1263 = vsub.f32 0.0, %v1247
    %v1264 = vsub.f32 0.0, %v1248
    %v1265 = vsub.f32 0.0, %v1249
    %v1266 = vsub.f32 0.0, %v1250
    %v1267 = vsub.f32 0.0, %v1251
    %v1268 = vsub.f32 0.0, %v1252
    %v1269 = vsub.f32 0.0, %v1253
    %v1270 = vsub.f32 0.0, %v1254
    %v1271 = vsub.f32 0.0, %v1255
    %v1272 = vsub.f32 0.0, %v1256
    %v1273 = vsub.f32 0.0, %v1257
    %v1274 = vsub.f32 0.0, %v1258
    %v1275 = vsub.f32 0.0, %v1259
    %v1276 = vsub.f32 0.0, %v1260
    %v1277 = vsub.f32 0.0, %v1261
    %v1278 = vmul.f32 %v1262, 1.442695
    %v1279 = vpow.pop %v1278
    %v1280 = vmul.f32 %v1263, 1.442695
    %v1281 = vpow.pop %v1280
    %v1282 = vmul.f32 %v1264, 1.442695
    %v1283 = vpow.pop %v1282
    %v1284 = vmul.f32 %v1265, 1.442695
    %v1285 = vpow.pop %v1284
    %v1286 = vmul.f32 %v1266, 1.442695
    %v1287 = vpow.pop %v1286
    %v1288 = vmul.f32 %v1267, 1.442695
    %v1289 = vpow.pop %v1288
    %v1290 = vmul.f32 %v1268, 1.442695
    %v1291 = vpow.pop %v1290
    %v1292 = vmul.f32 %v1269, 1.442695
    %v1293 = vpow.pop %v1292
    %v1294 = vmul.f32 %v1270, 1.442695
    %v1295 = vpow.pop %v1294
    %v1296 = vmul.f32 %v1271, 1.442695
    %v1297 = vpow.pop %v1296
    %v1298 = vmul.f32 %v1272, 1.442695
    %v1299 = vpow.pop %v1298
    %v1300 = vmul.f32 %v1273, 1.442695
    %v1301 = vpow.pop %v1300
    %v1302 = vmul.f32 %v1274, 1.442695
    %v1303 = vpow.pop %v1302
    %v1304 = vmul.f32 %v1275, 1.442695
    %v1305 = vpow.pop %v1304
    %v1306 = vmul.f32 %v1276, 1.442695
    %v1307 = vpow.pop %v1306
    %v1308 = vmul.f32 %v1277, 1.442695
    %v1309 = vpow.pop %v1308
    %v1310 = vadd.f32 %v1279, 1.0
    %v1311 = vlog2.pop %v1310
    %v1312 = vmul.f32 %v1311, 0.6931472
    %v1313 = vmul.f32 -0.5, %v1279
    %v1314 = vadd.f32 %v1313, 1.0
    %v1315 = vmul.f32 %v1314, %v1279
    %v1316 = vand.u32 2147483647, %v1279
    %vm1317 = vcmp.lt.f32.partialorder %v1316, 0.0004427343
    %v1318 = vsel %vm1317, %v1315, %v1312
    %v1319 = vadd.f32 %v1281, 1.0
    %v1320 = vlog2.pop %v1319
    %v1321 = vmul.f32 %v1320, 0.6931472
    %v1322 = vmul.f32 -0.5, %v1281
    %v1323 = vadd.f32 %v1322, 1.0
    %v1324 = vmul.f32 %v1323, %v1281
    %v1325 = vand.u32 2147483647, %v1281
    %vm1326 = vcmp.lt.f32.partialorder %v1325, 0.0004427343
    %v1327 = vsel %vm1326, %v1324, %v1321
    %v1328 = vadd.f32 %v1283, 1.0
    %v1329 = vlog2.pop %v1328
    %v1330 = vmul.f32 %v1329, 0.6931472
    %v1331 = vmul.f32 -0.5, %v1283
    %v1332 = vadd.f32 %v1331, 1.0
    %v1333 = vmul.f32 %v1332, %v1283
    %v1334 = vand.u32 2147483647, %v1283
    %vm1335 = vcmp.lt.f32.partialorder %v1334, 0.0004427343
    %v1336 = vsel %vm1335, %v1333, %v1330
    %v1337 = vadd.f32 %v1285, 1.0
    %v1338 = vlog2.pop %v1337
    %v1339 = vmul.f32 %v1338, 0.6931472
    %v1340 = vmul.f32 -0.5, %v1285
    %v1341 = vadd.f32 %v1340, 1.0
    %v1342 = vmul.f32 %v1341, %v1285
    %v1343 = vand.u32 2147483647, %v1285
    %vm1344 = vcmp.lt.f32.partialorder %v1343, 0.0004427343
    %v1345 = vsel %vm1344, %v1342, %v1339
    %v1346 = vadd.f32 %v1287, 1.0
    %v1347 = vlog2.pop %v1346
    %v1348 = vmul.f32 %v1347, 0.6931472
    %v1349 = vmul.f32 -0.5, %v1287
    %v1350 = vadd.f32 %v1349, 1.0
    %v1351 = vmul.f32 %v1350, %v1287
    %v1352 = vand.u32 2147483647, %v1287
    %vm1353 = vcmp.lt.f32.partialorder %v1352, 0.0004427343
    %v1354 = vsel %vm1353, %v1351, %v1348
    %v1355 = vadd.f32 %v1289, 1.0
    %v1356 = vlog2.pop %v1355
    %v1357 = vmul.f32 %v1356, 0.6931472
    %v1358 = vmul.f32 -0.5, %v1289
    %v1359 = vadd.f32 %v1358, 1.0
    %v1360 = vmul.f32 %v1359, %v1289
    %v1361 = vand.u32 2147483647, %v1289
    %vm1362 = vcmp.lt.f32.partialorder %v1361, 0.0004427343
    %v1363 = vsel %vm1362, %v1360, %v1357
    %v1364 = vadd.f32 %v1291, 1.0
    %v1365 = vlog2.pop %v1364
    %v1366 = vmul.f32 %v1365, 0.6931472
    %v1367 = vmul.f32 -0.5, %v1291
    %v1368 = vadd.f32 %v1367, 1.0
    %v1369 = vmul.f32 %v1368, %v1291
    %v1370 = vand.u32 2147483647, %v1291
    %vm1371 = vcmp.lt.f32.partialorder %v1370, 0.0004427343
    %v1372 = vsel %vm1371, %v1369, %v1366
    %v1373 = vadd.f32 %v1293, 1.0
    %v1374 = vlog2.pop %v1373
    %v1375 = vmul.f32 %v1374, 0.6931472
    %v1376 = vmul.f32 -0.5, %v1293
    %v1377 = vadd.f32 %v1376, 1.0
    %v1378 = vmul.f32 %v1377, %v1293
    %v1379 = vand.u32 2147483647, %v1293
    %vm1380 = vcmp.lt.f32.partialorder %v1379, 0.0004427343
    %v1381 = vsel %vm1380, %v1378, %v1375
    %v1382 = vadd.f32 %v1295, 1.0
    %v1383 = vlog2.pop %v1382
    %v1384 = vmul.f32 %v1383, 0.6931472
    %v1385 = vmul.f32 -0.5, %v1295
    %v1386 = vadd.f32 %v1385, 1.0
    %v1387 = vmul.f32 %v1386, %v1295
    %v1388 = vand.u32 2147483647, %v1295
    %vm1389 = vcmp.lt.f32.partialorder %v1388, 0.0004427343
    %v1390 = vsel %vm1389, %v1387, %v1384
    %v1391 = vadd.f32 %v1297, 1.0
    %v1392 = vlog2.pop %v1391
    %v1393 = vmul.f32 %v1392, 0.6931472
    %v1394 = vmul.f32 -0.5, %v1297
    %v1395 = vadd.f32 %v1394, 1.0
    %v1396 = vmul.f32 %v1395, %v1297
    %v1397 = vand.u32 2147483647, %v1297
    %vm1398 = vcmp.lt.f32.partialorder %v1397, 0.0004427343
    %v1399 = vsel %vm1398, %v1396, %v1393
    %v1400 = vadd.f32 %v1299, 1.0
    %v1401 = vlog2.pop %v1400
    %v1402 = vmul.f32 %v1401, 0.6931472
    %v1403 = vmul.f32 -0.5, %v1299
    %v1404 = vadd.f32 %v1403, 1.0
    %v1405 = vmul.f32 %v1404, %v1299
    %v1406 = vand.u32 2147483647, %v1299
    %vm1407 = vcmp.lt.f32.partialorder %v1406, 0.0004427343
    %v1408 = vsel %vm1407, %v1405, %v1402
    %v1409 = vadd.f32 %v1301, 1.0
    %v1410 = vlog2.pop %v1409
    %v1411 = vmul.f32 %v1410, 0.6931472
    %v1412 = vmul.f32 -0.5, %v1301
    %v1413 = vadd.f32 %v1412, 1.0
    %v1414 = vmul.f32 %v1413, %v1301
    %v1415 = vand.u32 2147483647, %v1301
    %vm1416 = vcmp.lt.f32.partialorder %v1415, 0.0004427343
    %v1417 = vsel %vm1416, %v1414, %v1411
    %v1418 = vadd.f32 %v1303, 1.0
    %v1419 = vlog2.pop %v1418
    %v1420 = vmul.f32 %v1419, 0.6931472
    %v1421 = vmul.f32 -0.5, %v1303
    %v1422 = vadd.f32 %v1421, 1.0
    %v1423 = vmul.f32 %v1422, %v1303
    %v1424 = vand.u32 2147483647, %v1303
    %vm1425 = vcmp.lt.f32.partialorder %v1424, 0.0004427343
    %v1426 = vsel %vm1425, %v1423, %v1420
    %v1427 = vadd.f32 %v1305, 1.0
    %v1428 = vlog2.pop %v1427
    %v1429 = vmul.f32 %v1428, 0.6931472
    %v1430 = vmul.f32 -0.5, %v1305
    %v1431 = vadd.f32 %v1430, 1.0
    %v1432 = vmul.f32 %v1431, %v1305
    %v1433 = vand.u32 2147483647, %v1305
    %vm1434 = vcmp.lt.f32.partialorder %v1433, 0.0004427343
    %v1435 = vsel %vm1434, %v1432, %v1429
    %v1436 = vadd.f32 %v1307, 1.0
    %v1437 = vlog2.pop %v1436
    %v1438 = vmul.f32 %v1437, 0.6931472
    %v1439 = vmul.f32 -0.5, %v1307
    %v1440 = vadd.f32 %v1439, 1.0
    %v1441 = vmul.f32 %v1440, %v1307
    %v1442 = vand.u32 2147483647, %v1307
    %vm1443 = vcmp.lt.f32.partialorder %v1442, 0.0004427343
    %v1444 = vsel %vm1443, %v1441, %v1438
    %v1445 = vadd.f32 %v1309, 1.0
    %v1446 = vlog2.pop %v1445
    %v1447 = vmul.f32 %v1446, 0.6931472
    %v1448 = vmul.f32 -0.5, %v1309
    %v1449 = vadd.f32 %v1448, 1.0
    %v1450 = vmul.f32 %v1449, %v1309
    %v1451 = vand.u32 2147483647, %v1309
    %vm1452 = vcmp.lt.f32.partialorder %v1451, 0.0004427343
    %v1453 = vsel %vm1452, %v1450, %v1447
    %v1454 = vadd.f32 %v1230, %v1318
    %v1455 = vadd.f32 %v1231, %v1327
    %v1456 = vadd.f32 %v1232, %v1336
    %v1457 = vadd.f32 %v1233, %v1345
    %v1458 = vadd.f32 %v1234, %v1354
    %v1459 = vadd.f32 %v1235, %v1363
    %v1460 = vadd.f32 %v1236, %v1372
    %v1461 = vadd.f32 %v1237, %v1381
    %v1462 = vadd.f32 %v1238, %v1390
    %v1463 = vadd.f32 %v1239, %v1399
    %v1464 = vadd.f32 %v1240, %v1408
    %v1465 = vadd.f32 %v1241, %v1417
    %v1466 = vadd.f32 %v1242, %v1426
    %v1467 = vadd.f32 %v1243, %v1435
    %v1468 = vadd.f32 %v1244, %v1444
    %v1469 = vadd.f32 %v1245, %v1453
    %vm1470 = vcmp.lt.s32.totalorder %v47, 16
    %1487 = vset.pattern.permute.xlu0 0
    %1488 = vperm.xlu0 %1487, %v1454
    %v1489 = vpop.permute.xlu0 %1488
    %1490 = vset.pattern.permute.xlu0 0
    %1491 = vperm.xlu0 %1490, %v1455
    %v1492 = vpop.permute.xlu0 %1491
    %1493 = vset.pattern.permute.xlu0 0
    %1494 = vperm.xlu0 %1493, %v1456
    %v1495 = vpop.permute.xlu0 %1494
    %1496 = vset.pattern.permute.xlu0 0
    %1497 = vperm.xlu0 %1496, %v1457
    %v1498 = vpop.permute.xlu0 %1497
    %1499 = vset.pattern.permute.xlu0 0
    %1500 = vperm.xlu0 %1499, %v1458
    %v1501 = vpop.permute.xlu0 %1500
    %1502 = vset.pattern.permute.xlu0 0
    %1503 = vperm.xlu0 %1502, %v1459
    %v1504 = vpop.permute.xlu0 %1503
    %1505 = vset.pattern.permute.xlu0 0
    %1506 = vperm.xlu0 %1505, %v1460
    %v1507 = vpop.permute.xlu0 %1506
    %1508 = vset.pattern.permute.xlu0 0
    %1509 = vperm.xlu0 %1508, %v1461
    %v1510 = vpop.permute.xlu0 %1509
    %1511 = vset.pattern.permute.xlu0 0
    %1512 = vperm.xlu0 %1511, %v1462
    %v1513 = vpop.permute.xlu0 %1512
    %1514 = vset.pattern.permute.xlu0 0
    %1515 = vperm.xlu0 %1514, %v1463
    %v1516 = vpop.permute.xlu0 %1515
    %1517 = vset.pattern.permute.xlu0 0
    %1518 = vperm.xlu0 %1517, %v1464
    %v1519 = vpop.permute.xlu0 %1518
    %1520 = vset.pattern.permute.xlu0 0
    %1521 = vperm.xlu0 %1520, %v1465
    %v1522 = vpop.permute.xlu0 %1521
    %1523 = vset.pattern.permute.xlu0 0
    %1524 = vperm.xlu0 %1523, %v1466
    %v1525 = vpop.permute.xlu0 %1524
    %1526 = vset.pattern.permute.xlu0 0
    %1527 = vperm.xlu0 %1526, %v1467
    %v1528 = vpop.permute.xlu0 %1527
    %1529 = vset.pattern.permute.xlu0 0
    %1530 = vperm.xlu0 %1529, %v1468
    %v1531 = vpop.permute.xlu0 %1530
    %1532 = vset.pattern.permute.xlu0 0
    %1533 = vperm.xlu0 %1532, %v1469
    %v1534 = vpop.permute.xlu0 %1533
    %v1535 = vlaneseq
    %v1536 = vshrl.u32 %v1535, 7
    %v1537 = vsub.s32 %v47, %v1536
    %v1538 = vrot.slane %v1489, %v1537
    %v1539 = vlaneseq
    %v1540 = vshrl.u32 %v1539, 7
    %v1541 = vsub.s32 %v492, %v1540
    %v1542 = vrot.slane %v1492, %v1541
    %v1543 = vsel %vm497, %v1542, %v1538
    %v1544 = vlaneseq
    %v1545 = vshrl.u32 %v1544, 7
    %v1546 = vsub.s32 %v499, %v1545
    %v1547 = vrot.slane %v1495, %v1546
    %v1548 = vsel %vm504, %v1547, %v1543
    %v1549 = vlaneseq
    %v1550 = vshrl.u32 %v1549, 7
    %v1551 = vsub.s32 %v506, %v1550
    %v1552 = vrot.slane %v1498, %v1551
    %v1553 = vsel %vm511, %v1552, %v1548
    %v1554 = vlaneseq
    %v1555 = vshrl.u32 %v1554, 7
    %v1556 = vsub.s32 %v513, %v1555
    %v1557 = vrot.slane %v1501, %v1556
    %v1558 = vsel %vm518, %v1557, %v1553
    %v1559 = vlaneseq
    %v1560 = vshrl.u32 %v1559, 7
    %v1561 = vsub.s32 %v520, %v1560
    %v1562 = vrot.slane %v1504, %v1561
    %v1563 = vsel %vm525, %v1562, %v1558
    %v1564 = vlaneseq
    %v1565 = vshrl.u32 %v1564, 7
    %v1566 = vsub.s32 %v527, %v1565
    %v1567 = vrot.slane %v1507, %v1566
    %v1568 = vsel %vm532, %v1567, %v1563
    %v1569 = vlaneseq
    %v1570 = vshrl.u32 %v1569, 7
    %v1571 = vsub.s32 %v534, %v1570
    %v1572 = vrot.slane %v1510, %v1571
    %v1573 = vsel %vm539, %v1572, %v1568
    %v1574 = vlaneseq
    %v1575 = vshrl.u32 %v1574, 7
    %v1576 = vsub.s32 %v541, %v1575
    %v1577 = vrot.slane %v1513, %v1576
    %v1578 = vsel %vm546, %v1577, %v1573
    %v1579 = vlaneseq
    %v1580 = vshrl.u32 %v1579, 7
    %v1581 = vsub.s32 %v548, %v1580
    %v1582 = vrot.slane %v1516, %v1581
    %v1583 = vsel %vm553, %v1582, %v1578
    %v1584 = vlaneseq
    %v1585 = vshrl.u32 %v1584, 7
    %v1586 = vsub.s32 %v555, %v1585
    %v1587 = vrot.slane %v1519, %v1586
    %v1588 = vsel %vm560, %v1587, %v1583
    %v1589 = vlaneseq
    %v1590 = vshrl.u32 %v1589, 7
    %v1591 = vsub.s32 %v562, %v1590
    %v1592 = vrot.slane %v1522, %v1591
    %v1593 = vsel %vm567, %v1592, %v1588
    %v1594 = vlaneseq
    %v1595 = vshrl.u32 %v1594, 7
    %v1596 = vsub.s32 %v569, %v1595
    %v1597 = vrot.slane %v1525, %v1596
    %v1598 = vsel %vm574, %v1597, %v1593
    %v1599 = vlaneseq
    %v1600 = vshrl.u32 %v1599, 7
    %v1601 = vsub.s32 %v576, %v1600
    %v1602 = vrot.slane %v1528, %v1601
    %v1603 = vsel %vm581, %v1602, %v1598
    %v1604 = vlaneseq
    %v1605 = vshrl.u32 %v1604, 7
    %v1606 = vsub.s32 %v583, %v1605
    %v1607 = vrot.slane %v1531, %v1606
    %v1608 = vsel %vm588, %v1607, %v1603
    %v1609 = vlaneseq
    %v1610 = vshrl.u32 %v1609, 7
    %v1611 = vsub.s32 %v590, %v1610
    %v1612 = vrot.slane %v1534, %v1611
    %v1613 = vsel %vm595, %v1612, %v1608
    %v1615 = vsel %vm1470, %v1613, 0.0
    %v1616 = vsel %vm1102, %v1615, 0.0
    %1617 = vadd.xlane.f32.xlu0 %v1616
    %v1618 = vpop.xlane.xlu0 %1617
    %v1619 = vrot.slane %v1618, 4
    %v1620 = vadd.f32 %v1618, %v1619
    %v1621 = vrot.slane %v1620, 2
    %v1622 = vadd.f32 %v1620, %v1621
    %v1623 = vrot.slane %v1622, 1
    %v1624 = vadd.f32 %v1622, %v1623
    %s1625 = vtos %v1624
    %s1626 = sadd.f32 %s1112, %s1625
    %v1627 = vstv %s1626
    %vm1628 = vcmask 0
    %1629 = vst.msk [vmem:[#allocation13] sm:$0x1] %vm1628, %v1627
    // Predicated region
    $region36: #{tpu_custom_call.1} parent=1 // pred_check
      _
    $region37: #{tpu_custom_call.1} parent=1 // pred_check_branch
      %1631 = sbr.rel (0) target = $region39
    $region38: #{tpu_custom_call.1} parent=1 // pred_region
      %s1633 = ssub.s32 16, 16
      %1634 = vsyncadd [#allocation12], %s1633
      %s1636 = sshll.u32 [#allocation11], 4
      %s1637 = int_to_ptr.vmem [resolvable:$true] %s1636
      %1639 = dma.vmem_to_hbm [thread:$0]  %s1637, 16, %s9, [#allocation12]
    $region39: #{tpu_custom_call.1} parent=1 // pred_fallthru
      _
    // Predicated region
    $region40: #{tpu_custom_call.1} parent=1 // pred_check
      _
    $region41: #{tpu_custom_call.1} parent=1 // pred_check_branch
      %1641 = sbr.rel (0) target = $region43
    $region42: #{tpu_custom_call.1} parent=1 // pred_region
      %s1643 = ssub.s32 16, 16
      %1644 = vsyncadd [#allocation14], %s1643
      %s1646 = sshll.u32 [#allocation13], 4
      %s1647 = int_to_ptr.vmem [resolvable:$true] %s1646
      %1649 = dma.vmem_to_hbm [thread:$0]  %s1647, 16, %s10, [#allocation14]
    $region43: #{tpu_custom_call.1} parent=1 // pred_fallthru
      _
    // Predicated region
    $region44: #{tpu_custom_call.1} parent=1 // pred_check
      _
    $region45: #{tpu_custom_call.1} parent=1 // pred_check_branch
      %1651 = sbr.rel (0) target = $region47
    $region46: #{tpu_custom_call.1} parent=1 // pred_region
      %1652 = dma.done [#allocation12], 16
    $region47: #{tpu_custom_call.1} parent=1 // pred_fallthru
      _
    // Predicated region
    $region48: #{tpu_custom_call.1} parent=1 // pred_check
      _
    $region49: #{tpu_custom_call.1} parent=1 // pred_check_branch
      %1654 = sbr.rel (0) target = $region51
    $region50: #{tpu_custom_call.1} parent=1 // pred_region
      %1655 = dma.done [#allocation14], 16
    $region51: #{tpu_custom_call.1} parent=1 // pred_fallthru
      _
    %1656 = vsyncpa [#allocation12], 1
    %1657 = vsyncpa [#allocation14], 1

</llo_original>
